<compile_context>
chip_gen: v5e
topology: v5e:2x2
jax: 0.10.0
libtpu: 0.0.40
codegen_flags: <defaults>
</compile_context>

<pallas_src>
import functools

import jax
import jax.numpy as jnp
from jax.experimental import pallas as pl
from jax.experimental.pallas import tpu as pltpu


def _build_banded_weight(w_hwio, width):
    """Per-dy banded matrices for a SAME 2-D conv in channel-major lane layout.

    Activation rows are lane-dense as a[h, c*W + w] = z[h, w, c].  Returns
    M[ks, C_in*W, C_out*W] with
        M[dy, ci*W + wi, co*W + wo] = w_hwio[dy, wi - wo + pad, ci, co]
    (zero where the tap falls outside the kernel), so that
        y[h] = sum_dy  a_zero_padded_in_H[h + dy - pad] @ M[dy]
    reproduces the SAME-padded convolution.  Built once in the wrapper."""
    ks, ks2, c_in, c_out = w_hwio.shape
    assert ks == ks2
    pad = ks // 2
    wi = jnp.arange(width)[:, None]          # input column index
    wo = jnp.arange(width)[None, :]          # output column index
    dx = wi - wo + pad                       # tap linking wi -> wo
    valid = (dx >= 0) & (dx < ks)
    dxc = jnp.clip(dx, 0, ks - 1)
    taps = w_hwio[:, dxc]                                   # [dy, wi, wo, ci, co]
    taps = jnp.where(valid[None, :, :, None, None], taps, 0.0)
    m = jnp.transpose(taps, (0, 3, 1, 4, 2))                # [dy, ci, wi, co, wo]
    return m.reshape(ks, c_in * width, c_out * width)


def _orsnet_kernel(x_ref, m_ref, out_ref, zp_ref, zb_ref, *,
                   ks, n_blocks, nb, h, gap):
    # x_ref  : [nb, H, C*W]          f32   input chunk (single copy of x)
    # m_ref  : [n_blocks, ks, L, L]  bf16  banded conv weights (constant block)
    # out_ref: [nb, H, L]            f32   L = 2*C*W (lane-dense)
    # zp_ref : [T, L]                f32   activation interiors + zero halo/gap rows
    # zb_ref : [T, L]                bf16  shadow of zp (MXU LHS), updated per block
    pad = ks // 2
    cw = x_ref.shape[-1]
    L = out_ref.shape[-1]
    S = h + gap
    T = gap + nb * S
    M = T - 2 * gap          # conv-output rows produced per accumulating-dot chain

    # Zero the halo / gap rows (tile-aligned; they are never written elsewhere,
    # so interiors of each image see correct SAME zero padding in H).
    zf = jnp.zeros((gap, L), jnp.float32)
    zbz = jnp.zeros((gap, L), jnp.bfloat16)
    zp_ref[0:gap, :] = zf
    zb_ref[0:gap, :] = zbz
    for n in range(nb):
        r = gap + n * S + h
        zp_ref[r:r + gap, :] = zf
        zb_ref[r:r + gap, :] = zbz

    # z0 = concat(x, x) on channels, built directly in VMEM.
    for n in range(nb):
        r0 = gap + n * S
        xi = x_ref[n]
        zp_ref[r0:r0 + h, 0:cw] = xi
        zp_ref[r0:r0 + h, cw:2 * cw] = xi
        xb = xi.astype(jnp.bfloat16)
        zb_ref[r0:r0 + h, 0:cw] = xb
        zb_ref[r0:r0 + h, cw:2 * cw] = xb

    for blk in range(n_blocks):           # 3 fused ORBs; z never leaves VMEM
        # 3x3 conv as ks accumulating [M, L] @ [L, L] bf16 dots (f32 acc).
        y = jnp.dot(zb_ref[gap - pad:gap - pad + M, :], m_ref[blk, 0],
                    preferred_element_type=jnp.float32)
        for dy in range(1, ks):
            a = gap - pad + dy
            y += jnp.dot(zb_ref[a:a + M, :], m_ref[blk, dy],
                         preferred_element_type=jnp.float32)
        # torch.chunk + the two residual adds == one residual add on z
        # (body_tail is a single conv on the concatenated tensor, chunks are
        #  re-concatenated in the same channel order).
        for n in range(nb):
            r0 = gap + n * S
            z_new = zp_ref[r0:r0 + h, :] + y[n * S:n * S + h, :]
            zp_ref[r0:r0 + h, :] = z_new
            zb_ref[r0:r0 + h, :] = z_new.astype(jnp.bfloat16)

    for n in range(nb):
        r0 = gap + n * S
        out_ref[n] = zp_ref[r0:r0 + h, :].astype(out_ref.dtype)


def _pick_batch_chunk(n, h, l, gap, budget_bytes=6 << 20):
    """Largest divisor of n whose scratch + double-buffered I/O fits the budget."""
    nb = 1
    for cand in range(1, n + 1):
        if n % cand:
            continue
        t = gap + cand * (h + gap)
        scratch = t * l * (4 + 2)                  # f32 zp + bf16 shadow
        io = 2 * cand * h * (l // 2 + l) * 4       # in (C*W) + out (2CW), f32, 2 bufs
        if scratch + io <= budget_bytes:
            nb = cand
    return nb


def orsnet_forward(x_nchw, weights):
    """ORSNet forward.  x_nchw: [N, C, H, W] (PyTorch layout).
    weights: list of 3 HWIO conv weights [ks, ks, 2C, 2C].  Returns [N, 2C, H, W]."""
    N, C, H, W = x_nchw.shape
    ks = weights[0].shape[0]
    assert ks % 2 == 1, "SAME conv packing assumes odd kernel size"
    pad = ks // 2
    C2 = 2 * C
    CW = C * W
    L = C2 * W
    assert L % 128 == 0, "lane-dense layout requires 2*C*W to be a multiple of 128"
    n_blk = len(weights)

    gap = max(8, ((pad + 7) // 8) * 8)             # sublane-tile-aligned halo/gap
    nb = _pick_batch_chunk(N, H, L, gap)
    S = H + gap
    T = gap + nb * S

    # Channel-major lane layout: x[n, h, c*W + w].  Single copy of x only.
    x = jnp.transpose(x_nchw, (0, 2, 1, 3)).reshape(N, H, CW).astype(jnp.float32)
    m = jnp.stack([_build_banded_weight(w, W) for w in weights], axis=0)
    m = m.astype(jnp.bfloat16)                     # [n_blk, ks, L, L]

    kern = functools.partial(_orsnet_kernel, ks=ks, n_blocks=n_blk,
                             nb=nb, h=H, gap=gap)
    out = pl.pallas_call(
        kern,
        out_shape=jax.ShapeDtypeStruct((N, H, L), jnp.float32),
        grid=(N // nb,),
        in_specs=[
            pl.BlockSpec((nb, H, CW), lambda g: (g, 0, 0)),
            pl.BlockSpec((n_blk, ks, L, L), lambda g: (0, 0, 0, 0)),
        ],
        out_specs=pl.BlockSpec((nb, H, L), lambda g: (g, 0, 0)),
        scratch_shapes=[pltpu.VMEM((T, L), jnp.float32),
                        pltpu.VMEM((T, L), jnp.bfloat16)],
        compiler_params=pltpu.CompilerParams(
            dimension_semantics=("parallel",),
            # tuned for v7x's 64 MiB VMEM; raise toward ~96 MiB on v5e/v6e when
            # production-sized strips are used.
            vmem_limit_bytes=48 * 1024 * 1024),
    )(x, m)

    out = out.reshape(N, H, C2, W)                 # lane = c*W + w -> split
    return jnp.transpose(out, (0, 2, 1, 3))        # back to NCHW


# ---------------- references (plain JAX) for correctness check ----------------
def _ref_orsnet(x_nchw, weights, operand_dtype=jnp.float32, precision=None):
    x = jnp.transpose(x_nchw, (0, 2, 3, 1))
    z = jnp.concatenate([x, x], axis=-1).astype(jnp.float32)
    for w in weights:
        y = jax.lax.conv_general_dilated(
            z.astype(operand_dtype), w.astype(operand_dtype),
            window_strides=(1, 1), padding="SAME",
            dimension_numbers=("NHWC", "HWIO", "NHWC"),
            precision=precision,
            preferred_element_type=jnp.float32)
        z = z + y
    return jnp.transpose(z, (0, 3, 1, 2))


if __name__ == "__main__":
    # Module hyper-params (synthetic, small): n_feat=4, kernel_size=3; num_blk is
    # irrelevant since the FFC body is identity here.
    n_feat, kernel_size = 4, 3
    N, H, W = 2, 16, 16

    key = jax.random.PRNGKey(0)
    kx, k1, k2, k3 = jax.random.split(key, 4)
    x = jax.random.normal(kx, (N, n_feat, H, W), dtype=jnp.float32)  # NCHW input

    def init_w(k):
        return 0.05 * jax.random.normal(
            k, (kernel_size, kernel_size, 2 * n_feat, 2 * n_feat),
            dtype=jnp.float32)

    weights = [init_w(k1), init_w(k2), init_w(k3)]

    out = jax.block_until_ready(orsnet_forward(x, weights))
    assert out.shape == (N, 2 * n_feat, H, W), out.shape

    # Check against a reference using the same bf16 MXU operand precision.
    ref_bf16 = jax.block_until_ready(
        _ref_orsnet(x, weights, operand_dtype=jnp.bfloat16))
    err_bf16 = float(jnp.max(jnp.abs(out - ref_bf16)))
    assert err_bf16 < 1e-2, f"mismatch vs bf16-operand reference: {err_bf16}"

    # Sanity check against the full-f32 HIGHEST-precision reference.
    ref_f32 = jax.block_until_ready(
        _ref_orsnet(x, weights, operand_dtype=jnp.float32,
                    precision=jax.lax.Precision.HIGHEST))
    err_f32 = float(jnp.max(jnp.abs(out - ref_f32)))
    assert err_f32 < 5e-2, f"mismatch vs f32 reference: {err_f32}"

    print("KERNEL_OK")
</pallas_src>

<mosaic_0001>
module attributes {stable_mosaic.version = 11 : i64} {
  func.func @_orsnet_kernel(%arg0: i32, %arg1: memref<2x16x64xf32, #tpu.memory_space<vmem>>, %arg2: memref<3x3x128x128xbf16, #tpu.memory_space<vmem>>, %arg3: memref<2x16x128xf32, #tpu.memory_space<vmem>>, %arg4: memref<56x128xf32, #tpu.memory_space<vmem>>, %arg5: memref<56x128xbf16, #tpu.memory_space<vmem>>) attributes {dimension_semantics = [#tpu.dimension_semantics<parallel>], iteration_bounds = array<i64: 1>, scalar_prefetch = 0 : i64, scratch_operands = 2 : i64, tpu.core_type = #tpu.core_type<tc>, window_params = [{transform_indices = @transform_0, window_bounds = array<i64: 2, 16, 64>}, {pipeline_mode = #tpu.pipeline_mode<synchronous>, transform_indices = @transform_1, window_bounds = array<i64: 3, 3, 128, 128>}, {transform_indices = @transform_2, window_bounds = array<i64: 2, 16, 128>}]} {
    %cst = arith.constant 0.000000e+00 : f32
    %0 = vector.broadcast %cst : f32 to vector<8x128xf32>
    %cst_0 = arith.constant 0.000000e+00 : bf16
    %1 = vector.broadcast %cst_0 : bf16 to vector<8x128xbf16>
    %c0 = arith.constant 0 : index
    %c0_1 = arith.constant 0 : index
    %2 = vector.load %arg4[%c0, %c0_1] : memref<56x128xf32, #tpu.memory_space<vmem>>, vector<8x128xf32>
    tpu.vector_store %arg4[%c0, %c0_1], %0 {strides = array<i32>} : memref<56x128xf32, #tpu.memory_space<vmem>>, vector<8x128xf32>,
    %c0_2 = arith.constant 0 : index
    %c0_3 = arith.constant 0 : index
    %3 = vector.load %arg5[%c0_2, %c0_3] : memref<56x128xbf16, #tpu.memory_space<vmem>>, vector<8x128xbf16>
    tpu.vector_store %arg5[%c0_2, %c0_3], %1 {strides = array<i32>} : memref<56x128xbf16, #tpu.memory_space<vmem>>, vector<8x128xbf16>,
    %c24 = arith.constant 24 : index
    %c0_4 = arith.constant 0 : index
    %4 = vector.load %arg4[%c24, %c0_4] : memref<56x128xf32, #tpu.memory_space<vmem>>, vector<8x128xf32>
    tpu.vector_store %arg4[%c24, %c0_4], %0 {strides = array<i32>} : memref<56x128xf32, #tpu.memory_space<vmem>>, vector<8x128xf32>,
    %c24_5 = arith.constant 24 : index
    %c0_6 = arith.constant 0 : index
    %5 = vector.load %arg5[%c24_5, %c0_6] : memref<56x128xbf16, #tpu.memory_space<vmem>>, vector<8x128xbf16>
    tpu.vector_store %arg5[%c24_5, %c0_6], %1 {strides = array<i32>} : memref<56x128xbf16, #tpu.memory_space<vmem>>, vector<8x128xbf16>,
    %c48 = arith.constant 48 : index
    %c0_7 = arith.constant 0 : index
    %6 = vector.load %arg4[%c48, %c0_7] : memref<56x128xf32, #tpu.memory_space<vmem>>, vector<8x128xf32>
    tpu.vector_store %arg4[%c48, %c0_7], %0 {strides = array<i32>} : memref<56x128xf32, #tpu.memory_space<vmem>>, vector<8x128xf32>,
    %c48_8 = arith.constant 48 : index
    %c0_9 = arith.constant 0 : index
    %7 = vector.load %arg5[%c48_8, %c0_9] : memref<56x128xbf16, #tpu.memory_space<vmem>>, vector<8x128xbf16>
    tpu.vector_store %arg5[%c48_8, %c0_9], %1 {strides = array<i32>} : memref<56x128xbf16, #tpu.memory_space<vmem>>, vector<8x128xbf16>,
    %c0_10 = arith.constant 0 : index
    %c0_11 = arith.constant 0 : index
    %c0_12 = arith.constant 0 : index
    %8 = vector.load %arg1[%c0_10, %c0_11, %c0_12] : memref<2x16x64xf32, #tpu.memory_space<vmem>>, vector<1x16x64xf32>
    %9 = vector.shape_cast %8 : vector<1x16x64xf32> to vector<16x64xf32>
    %c8 = arith.constant 8 : index
    %c0_13 = arith.constant 0 : index
    %10 = vector.load %arg4[%c8, %c0_13] : memref<56x128xf32, #tpu.memory_space<vmem>>, vector<16x64xf32>
    tpu.vector_store %arg4[%c8, %c0_13], %9 {strides = array<i32>} : memref<56x128xf32, #tpu.memory_space<vmem>>, vector<16x64xf32>,
    %c8_14 = arith.constant 8 : index
    %c64 = arith.constant 64 : index
    %11 = vector.load %arg4[%c8_14, %c64] : memref<56x128xf32, #tpu.memory_space<vmem>>, vector<16x64xf32>
    tpu.vector_store %arg4[%c8_14, %c64], %9 {strides = array<i32>} : memref<56x128xf32, #tpu.memory_space<vmem>>, vector<16x64xf32>,
    %12 = arith.truncf %9 : vector<16x64xf32> to vector<16x64xbf16>
    %c8_15 = arith.constant 8 : index
    %c0_16 = arith.constant 0 : index
    %13 = vector.load %arg5[%c8_15, %c0_16] : memref<56x128xbf16, #tpu.memory_space<vmem>>, vector<16x64xbf16>
    tpu.vector_store %arg5[%c8_15, %c0_16], %12 {strides = array<i32>} : memref<56x128xbf16, #tpu.memory_space<vmem>>, vector<16x64xbf16>,
    %c8_17 = arith.constant 8 : index
    %c64_18 = arith.constant 64 : index
    %14 = vector.load %arg5[%c8_17, %c64_18] : memref<56x128xbf16, #tpu.memory_space<vmem>>, vector<16x64xbf16>
    tpu.vector_store %arg5[%c8_17, %c64_18], %12 {strides = array<i32>} : memref<56x128xbf16, #tpu.memory_space<vmem>>, vector<16x64xbf16>,
    %c1 = arith.constant 1 : index
    %c0_19 = arith.constant 0 : index
    %c0_20 = arith.constant 0 : index
    %15 = vector.load %arg1[%c1, %c0_19, %c0_20] : memref<2x16x64xf32, #tpu.memory_space<vmem>>, vector<1x16x64xf32>
    %16 = vector.shape_cast %15 : vector<1x16x64xf32> to vector<16x64xf32>
    %c32 = arith.constant 32 : index
    %c0_21 = arith.constant 0 : index
    %17 = vector.load %arg4[%c32, %c0_21] : memref<56x128xf32, #tpu.memory_space<vmem>>, vector<16x64xf32>
    tpu.vector_store %arg4[%c32, %c0_21], %16 {strides = array<i32>} : memref<56x128xf32, #tpu.memory_space<vmem>>, vector<16x64xf32>,
    %c32_22 = arith.constant 32 : index
    %c64_23 = arith.constant 64 : index
    %18 = vector.load %arg4[%c32_22, %c64_23] : memref<56x128xf32, #tpu.memory_space<vmem>>, vector<16x64xf32>
    tpu.vector_store %arg4[%c32_22, %c64_23], %16 {strides = array<i32>} : memref<56x128xf32, #tpu.memory_space<vmem>>, vector<16x64xf32>,
    %19 = arith.truncf %16 : vector<16x64xf32> to vector<16x64xbf16>
    %c32_24 = arith.constant 32 : index
    %c0_25 = arith.constant 0 : index
    %20 = vector.load %arg5[%c32_24, %c0_25] : memref<56x128xbf16, #tpu.memory_space<vmem>>, vector<16x64xbf16>
    tpu.vector_store %arg5[%c32_24, %c0_25], %19 {strides = array<i32>} : memref<56x128xbf16, #tpu.memory_space<vmem>>, vector<16x64xbf16>,
    %c32_26 = arith.constant 32 : index
    %c64_27 = arith.constant 64 : index
    %21 = vector.load %arg5[%c32_26, %c64_27] : memref<56x128xbf16, #tpu.memory_space<vmem>>, vector<16x64xbf16>
    tpu.vector_store %arg5[%c32_26, %c64_27], %19 {strides = array<i32>} : memref<56x128xbf16, #tpu.memory_space<vmem>>, vector<16x64xbf16>,
    %c7 = arith.constant 7 : index
    %c0_28 = arith.constant 0 : index
    %22 = vector.load %arg5[%c7, %c0_28] : memref<56x128xbf16, #tpu.memory_space<vmem>>, vector<40x128xbf16>
    %c0_29 = arith.constant 0 : index
    %c0_30 = arith.constant 0 : index
    %c0_31 = arith.constant 0 : index
    %c0_32 = arith.constant 0 : index
    %23 = vector.load %arg2[%c0_29, %c0_30, %c0_31, %c0_32] : memref<3x3x128x128xbf16, #tpu.memory_space<vmem>>, vector<1x1x128x128xbf16>
    %24 = vector.shape_cast %23 : vector<1x1x128x128xbf16> to vector<128x128xbf16>
    %cst_33 = arith.constant dense<0.000000e+00> : vector<40x128xf32>
    %25 = tpu.matmul %22, %24, %cst_33 {dimension_numbers = #tpu.dot_dimension_numbers<[1], [0], [0], [1], [0, 0, 1, 1], [], []>} : vector<40x128xbf16>, vector<128x128xbf16>, vector<40x128xf32> -> vector<40x128xf32>
    %c8_34 = arith.constant 8 : index
    %c0_35 = arith.constant 0 : index
    %26 = vector.load %arg5[%c8_34, %c0_35] : memref<56x128xbf16, #tpu.memory_space<vmem>>, vector<40x128xbf16>
    %c0_36 = arith.constant 0 : index
    %c1_37 = arith.constant 1 : index
    %c0_38 = arith.constant 0 : index
    %c0_39 = arith.constant 0 : index
    %27 = vector.load %arg2[%c0_36, %c1_37, %c0_38, %c0_39] : memref<3x3x128x128xbf16, #tpu.memory_space<vmem>>, vector<1x1x128x128xbf16>
    %28 = vector.shape_cast %27 : vector<1x1x128x128xbf16> to vector<128x128xbf16>
    %cst_40 = arith.constant dense<0.000000e+00> : vector<40x128xf32>
    %29 = tpu.matmul %26, %28, %cst_40 {dimension_numbers = #tpu.dot_dimension_numbers<[1], [0], [0], [1], [0, 0, 1, 1], [], []>} : vector<40x128xbf16>, vector<128x128xbf16>, vector<40x128xf32> -> vector<40x128xf32>
    %30 = arith.addf %25, %29 : vector<40x128xf32>
    %c9 = arith.constant 9 : index
    %c0_41 = arith.constant 0 : index
    %31 = vector.load %arg5[%c9, %c0_41] : memref<56x128xbf16, #tpu.memory_space<vmem>>, vector<40x128xbf16>
    %c0_42 = arith.constant 0 : index
    %c2 = arith.constant 2 : index
    %c0_43 = arith.constant 0 : index
    %c0_44 = arith.constant 0 : index
    %32 = vector.load %arg2[%c0_42, %c2, %c0_43, %c0_44] : memref<3x3x128x128xbf16, #tpu.memory_space<vmem>>, vector<1x1x128x128xbf16>
    %33 = vector.shape_cast %32 : vector<1x1x128x128xbf16> to vector<128x128xbf16>
    %cst_45 = arith.constant dense<0.000000e+00> : vector<40x128xf32>
    %34 = tpu.matmul %31, %33, %cst_45 {dimension_numbers = #tpu.dot_dimension_numbers<[1], [0], [0], [1], [0, 0, 1, 1], [], []>} : vector<40x128xbf16>, vector<128x128xbf16>, vector<40x128xf32> -> vector<40x128xf32>
    %35 = arith.addf %30, %34 : vector<40x128xf32>
    %c8_46 = arith.constant 8 : index
    %c0_47 = arith.constant 0 : index
    %36 = vector.load %arg4[%c8_46, %c0_47] : memref<56x128xf32, #tpu.memory_space<vmem>>, vector<16x128xf32>
    %37 = vector.extract_strided_slice %35 {offsets = [0, 0], sizes = [16, 128], strides = [1, 1]} : vector<40x128xf32> to vector<16x128xf32>
    %38 = arith.addf %36, %37 : vector<16x128xf32>
    %c8_48 = arith.constant 8 : index
    %c0_49 = arith.constant 0 : index
    %39 = vector.load %arg4[%c8_48, %c0_49] : memref<56x128xf32, #tpu.memory_space<vmem>>, vector<16x128xf32>
    tpu.vector_store %arg4[%c8_48, %c0_49], %38 {strides = array<i32>} : memref<56x128xf32, #tpu.memory_space<vmem>>, vector<16x128xf32>,
    %40 = arith.truncf %38 : vector<16x128xf32> to vector<16x128xbf16>
    %c8_50 = arith.constant 8 : index
    %c0_51 = arith.constant 0 : index
    %41 = vector.load %arg5[%c8_50, %c0_51] : memref<56x128xbf16, #tpu.memory_space<vmem>>, vector<16x128xbf16>
    tpu.vector_store %arg5[%c8_50, %c0_51], %40 {strides = array<i32>} : memref<56x128xbf16, #tpu.memory_space<vmem>>, vector<16x128xbf16>,
    %c32_52 = arith.constant 32 : index
    %c0_53 = arith.constant 0 : index
    %42 = vector.load %arg4[%c32_52, %c0_53] : memref<56x128xf32, #tpu.memory_space<vmem>>, vector<16x128xf32>
    %43 = vector.extract_strided_slice %35 {offsets = [24, 0], sizes = [16, 128], strides = [1, 1]} : vector<40x128xf32> to vector<16x128xf32>
    %44 = arith.addf %42, %43 : vector<16x128xf32>
    %c32_54 = arith.constant 32 : index
    %c0_55 = arith.constant 0 : index
    %45 = vector.load %arg4[%c32_54, %c0_55] : memref<56x128xf32, #tpu.memory_space<vmem>>, vector<16x128xf32>
    tpu.vector_store %arg4[%c32_54, %c0_55], %44 {strides = array<i32>} : memref<56x128xf32, #tpu.memory_space<vmem>>, vector<16x128xf32>,
    %46 = arith.truncf %44 : vector<16x128xf32> to vector<16x128xbf16>
    %c32_56 = arith.constant 32 : index
    %c0_57 = arith.constant 0 : index
    %47 = vector.load %arg5[%c32_56, %c0_57] : memref<56x128xbf16, #tpu.memory_space<vmem>>, vector<16x128xbf16>
    tpu.vector_store %arg5[%c32_56, %c0_57], %46 {strides = array<i32>} : memref<56x128xbf16, #tpu.memory_space<vmem>>, vector<16x128xbf16>,
    %c7_58 = arith.constant 7 : index
    %c0_59 = arith.constant 0 : index
    %48 = vector.load %arg5[%c7_58, %c0_59] : memref<56x128xbf16, #tpu.memory_space<vmem>>, vector<40x128xbf16>
    %c1_60 = arith.constant 1 : index
    %c0_61 = arith.constant 0 : index
    %c0_62 = arith.constant 0 : index
    %c0_63 = arith.constant 0 : index
    %49 = vector.load %arg2[%c1_60, %c0_61, %c0_62, %c0_63] : memref<3x3x128x128xbf16, #tpu.memory_space<vmem>>, vector<1x1x128x128xbf16>
    %50 = vector.shape_cast %49 : vector<1x1x128x128xbf16> to vector<128x128xbf16>
    %cst_64 = arith.constant dense<0.000000e+00> : vector<40x128xf32>
    %51 = tpu.matmul %48, %50, %cst_64 {dimension_numbers = #tpu.dot_dimension_numbers<[1], [0], [0], [1], [0, 0, 1, 1], [], []>} : vector<40x128xbf16>, vector<128x128xbf16>, vector<40x128xf32> -> vector<40x128xf32>
    %c8_65 = arith.constant 8 : index
    %c0_66 = arith.constant 0 : index
    %52 = vector.load %arg5[%c8_65, %c0_66] : memref<56x128xbf16, #tpu.memory_space<vmem>>, vector<40x128xbf16>
    %c1_67 = arith.constant 1 : index
    %c1_68 = arith.constant 1 : index
    %c0_69 = arith.constant 0 : index
    %c0_70 = arith.constant 0 : index
    %53 = vector.load %arg2[%c1_67, %c1_68, %c0_69, %c0_70] : memref<3x3x128x128xbf16, #tpu.memory_space<vmem>>, vector<1x1x128x128xbf16>
    %54 = vector.shape_cast %53 : vector<1x1x128x128xbf16> to vector<128x128xbf16>
    %cst_71 = arith.constant dense<0.000000e+00> : vector<40x128xf32>
    %55 = tpu.matmul %52, %54, %cst_71 {dimension_numbers = #tpu.dot_dimension_numbers<[1], [0], [0], [1], [0, 0, 1, 1], [], []>} : vector<40x128xbf16>, vector<128x128xbf16>, vector<40x128xf32> -> vector<40x128xf32>
    %56 = arith.addf %51, %55 : vector<40x128xf32>
    %c9_72 = arith.constant 9 : index
    %c0_73 = arith.constant 0 : index
    %57 = vector.load %arg5[%c9_72, %c0_73] : memref<56x128xbf16, #tpu.memory_space<vmem>>, vector<40x128xbf16>
    %c1_74 = arith.constant 1 : index
    %c2_75 = arith.constant 2 : index
    %c0_76 = arith.constant 0 : index
    %c0_77 = arith.constant 0 : index
    %58 = vector.load %arg2[%c1_74, %c2_75, %c0_76, %c0_77] : memref<3x3x128x128xbf16, #tpu.memory_space<vmem>>, vector<1x1x128x128xbf16>
    %59 = vector.shape_cast %58 : vector<1x1x128x128xbf16> to vector<128x128xbf16>
    %cst_78 = arith.constant dense<0.000000e+00> : vector<40x128xf32>
    %60 = tpu.matmul %57, %59, %cst_78 {dimension_numbers = #tpu.dot_dimension_numbers<[1], [0], [0], [1], [0, 0, 1, 1], [], []>} : vector<40x128xbf16>, vector<128x128xbf16>, vector<40x128xf32> -> vector<40x128xf32>
    %61 = arith.addf %56, %60 : vector<40x128xf32>
    %c8_79 = arith.constant 8 : index
    %c0_80 = arith.constant 0 : index
    %62 = vector.load %arg4[%c8_79, %c0_80] : memref<56x128xf32, #tpu.memory_space<vmem>>, vector<16x128xf32>
    %63 = vector.extract_strided_slice %61 {offsets = [0, 0], sizes = [16, 128], strides = [1, 1]} : vector<40x128xf32> to vector<16x128xf32>
    %64 = arith.addf %62, %63 : vector<16x128xf32>
    %c8_81 = arith.constant 8 : index
    %c0_82 = arith.constant 0 : index
    %65 = vector.load %arg4[%c8_81, %c0_82] : memref<56x128xf32, #tpu.memory_space<vmem>>, vector<16x128xf32>
    tpu.vector_store %arg4[%c8_81, %c0_82], %64 {strides = array<i32>} : memref<56x128xf32, #tpu.memory_space<vmem>>, vector<16x128xf32>,
    %66 = arith.truncf %64 : vector<16x128xf32> to vector<16x128xbf16>
    %c8_83 = arith.constant 8 : index
    %c0_84 = arith.constant 0 : index
    %67 = vector.load %arg5[%c8_83, %c0_84] : memref<56x128xbf16, #tpu.memory_space<vmem>>, vector<16x128xbf16>
    tpu.vector_store %arg5[%c8_83, %c0_84], %66 {strides = array<i32>} : memref<56x128xbf16, #tpu.memory_space<vmem>>, vector<16x128xbf16>,
    %c32_85 = arith.constant 32 : index
    %c0_86 = arith.constant 0 : index
    %68 = vector.load %arg4[%c32_85, %c0_86] : memref<56x128xf32, #tpu.memory_space<vmem>>, vector<16x128xf32>
    %69 = vector.extract_strided_slice %61 {offsets = [24, 0], sizes = [16, 128], strides = [1, 1]} : vector<40x128xf32> to vector<16x128xf32>
    %70 = arith.addf %68, %69 : vector<16x128xf32>
    %c32_87 = arith.constant 32 : index
    %c0_88 = arith.constant 0 : index
    %71 = vector.load %arg4[%c32_87, %c0_88] : memref<56x128xf32, #tpu.memory_space<vmem>>, vector<16x128xf32>
    tpu.vector_store %arg4[%c32_87, %c0_88], %70 {strides = array<i32>} : memref<56x128xf32, #tpu.memory_space<vmem>>, vector<16x128xf32>,
    %72 = arith.truncf %70 : vector<16x128xf32> to vector<16x128xbf16>
    %c32_89 = arith.constant 32 : index
    %c0_90 = arith.constant 0 : index
    %73 = vector.load %arg5[%c32_89, %c0_90] : memref<56x128xbf16, #tpu.memory_space<vmem>>, vector<16x128xbf16>
    tpu.vector_store %arg5[%c32_89, %c0_90], %72 {strides = array<i32>} : memref<56x128xbf16, #tpu.memory_space<vmem>>, vector<16x128xbf16>,
    %c7_91 = arith.constant 7 : index
    %c0_92 = arith.constant 0 : index
    %74 = vector.load %arg5[%c7_91, %c0_92] : memref<56x128xbf16, #tpu.memory_space<vmem>>, vector<40x128xbf16>
    %c2_93 = arith.constant 2 : index
    %c0_94 = arith.constant 0 : index
    %c0_95 = arith.constant 0 : index
    %c0_96 = arith.constant 0 : index
    %75 = vector.load %arg2[%c2_93, %c0_94, %c0_95, %c0_96] : memref<3x3x128x128xbf16, #tpu.memory_space<vmem>>, vector<1x1x128x128xbf16>
    %76 = vector.shape_cast %75 : vector<1x1x128x128xbf16> to vector<128x128xbf16>
    %cst_97 = arith.constant dense<0.000000e+00> : vector<40x128xf32>
    %77 = tpu.matmul %74, %76, %cst_97 {dimension_numbers = #tpu.dot_dimension_numbers<[1], [0], [0], [1], [0, 0, 1, 1], [], []>} : vector<40x128xbf16>, vector<128x128xbf16>, vector<40x128xf32> -> vector<40x128xf32>
    %c8_98 = arith.constant 8 : index
    %c0_99 = arith.constant 0 : index
    %78 = vector.load %arg5[%c8_98, %c0_99] : memref<56x128xbf16, #tpu.memory_space<vmem>>, vector<40x128xbf16>
    %c2_100 = arith.constant 2 : index
    %c1_101 = arith.constant 1 : index
    %c0_102 = arith.constant 0 : index
    %c0_103 = arith.constant 0 : index
    %79 = vector.load %arg2[%c2_100, %c1_101, %c0_102, %c0_103] : memref<3x3x128x128xbf16, #tpu.memory_space<vmem>>, vector<1x1x128x128xbf16>
    %80 = vector.shape_cast %79 : vector<1x1x128x128xbf16> to vector<128x128xbf16>
    %cst_104 = arith.constant dense<0.000000e+00> : vector<40x128xf32>
    %81 = tpu.matmul %78, %80, %cst_104 {dimension_numbers = #tpu.dot_dimension_numbers<[1], [0], [0], [1], [0, 0, 1, 1], [], []>} : vector<40x128xbf16>, vector<128x128xbf16>, vector<40x128xf32> -> vector<40x128xf32>
    %82 = arith.addf %77, %81 : vector<40x128xf32>
    %c9_105 = arith.constant 9 : index
    %c0_106 = arith.constant 0 : index
    %83 = vector.load %arg5[%c9_105, %c0_106] : memref<56x128xbf16, #tpu.memory_space<vmem>>, vector<40x128xbf16>
    %c2_107 = arith.constant 2 : index
    %c2_108 = arith.constant 2 : index
    %c0_109 = arith.constant 0 : index
    %c0_110 = arith.constant 0 : index
    %84 = vector.load %arg2[%c2_107, %c2_108, %c0_109, %c0_110] : memref<3x3x128x128xbf16, #tpu.memory_space<vmem>>, vector<1x1x128x128xbf16>
    %85 = vector.shape_cast %84 : vector<1x1x128x128xbf16> to vector<128x128xbf16>
    %cst_111 = arith.constant dense<0.000000e+00> : vector<40x128xf32>
    %86 = tpu.matmul %83, %85, %cst_111 {dimension_numbers = #tpu.dot_dimension_numbers<[1], [0], [0], [1], [0, 0, 1, 1], [], []>} : vector<40x128xbf16>, vector<128x128xbf16>, vector<40x128xf32> -> vector<40x128xf32>
    %87 = arith.addf %82, %86 : vector<40x128xf32>
    %c8_112 = arith.constant 8 : index
    %c0_113 = arith.constant 0 : index
    %88 = vector.load %arg4[%c8_112, %c0_113] : memref<56x128xf32, #tpu.memory_space<vmem>>, vector<16x128xf32>
    %89 = vector.extract_strided_slice %87 {offsets = [0, 0], sizes = [16, 128], strides = [1, 1]} : vector<40x128xf32> to vector<16x128xf32>
    %90 = arith.addf %88, %89 : vector<16x128xf32>
    %c8_114 = arith.constant 8 : index
    %c0_115 = arith.constant 0 : index
    %91 = vector.load %arg4[%c8_114, %c0_115] : memref<56x128xf32, #tpu.memory_space<vmem>>, vector<16x128xf32>
    tpu.vector_store %arg4[%c8_114, %c0_115], %90 {strides = array<i32>} : memref<56x128xf32, #tpu.memory_space<vmem>>, vector<16x128xf32>,
    %92 = arith.truncf %90 : vector<16x128xf32> to vector<16x128xbf16>
    %c8_116 = arith.constant 8 : index
    %c0_117 = arith.constant 0 : index
    %93 = vector.load %arg5[%c8_116, %c0_117] : memref<56x128xbf16, #tpu.memory_space<vmem>>, vector<16x128xbf16>
    tpu.vector_store %arg5[%c8_116, %c0_117], %92 {strides = array<i32>} : memref<56x128xbf16, #tpu.memory_space<vmem>>, vector<16x128xbf16>,
    %c32_118 = arith.constant 32 : index
    %c0_119 = arith.constant 0 : index
    %94 = vector.load %arg4[%c32_118, %c0_119] : memref<56x128xf32, #tpu.memory_space<vmem>>, vector<16x128xf32>
    %95 = vector.extract_strided_slice %87 {offsets = [24, 0], sizes = [16, 128], strides = [1, 1]} : vector<40x128xf32> to vector<16x128xf32>
    %96 = arith.addf %94, %95 : vector<16x128xf32>
    %c32_120 = arith.constant 32 : index
    %c0_121 = arith.constant 0 : index
    %97 = vector.load %arg4[%c32_120, %c0_121] : memref<56x128xf32, #tpu.memory_space<vmem>>, vector<16x128xf32>
    tpu.vector_store %arg4[%c32_120, %c0_121], %96 {strides = array<i32>} : memref<56x128xf32, #tpu.memory_space<vmem>>, vector<16x128xf32>,
    %98 = arith.truncf %96 : vector<16x128xf32> to vector<16x128xbf16>
    %c32_122 = arith.constant 32 : index
    %c0_123 = arith.constant 0 : index
    %99 = vector.load %arg5[%c32_122, %c0_123] : memref<56x128xbf16, #tpu.memory_space<vmem>>, vector<16x128xbf16>
    tpu.vector_store %arg5[%c32_122, %c0_123], %98 {strides = array<i32>} : memref<56x128xbf16, #tpu.memory_space<vmem>>, vector<16x128xbf16>,
    %c8_124 = arith.constant 8 : index
    %c0_125 = arith.constant 0 : index
    %100 = vector.load %arg4[%c8_124, %c0_125] : memref<56x128xf32, #tpu.memory_space<vmem>>, vector<16x128xf32>
    %c0_126 = arith.constant 0 : index
    %c0_127 = arith.constant 0 : index
    %c0_128 = arith.constant 0 : index
    %101 = vector.load %arg3[%c0_126, %c0_127, %c0_128] : memref<2x16x128xf32, #tpu.memory_space<vmem>>, vector<1x16x128xf32>
    %102 = vector.shape_cast %101 : vector<1x16x128xf32> to vector<16x128xf32>
    %103 = vector.shape_cast %100 : vector<16x128xf32> to vector<1x16x128xf32>
    tpu.vector_store %arg3[%c0_126, %c0_127, %c0_128], %103 {strides = array<i32>} : memref<2x16x128xf32, #tpu.memory_space<vmem>>, vector<1x16x128xf32>,
    %c32_129 = arith.constant 32 : index
    %c0_130 = arith.constant 0 : index
    %104 = vector.load %arg4[%c32_129, %c0_130] : memref<56x128xf32, #tpu.memory_space<vmem>>, vector<16x128xf32>
    %c1_131 = arith.constant 1 : index
    %c0_132 = arith.constant 0 : index
    %c0_133 = arith.constant 0 : index
    %105 = vector.load %arg3[%c1_131, %c0_132, %c0_133] : memref<2x16x128xf32, #tpu.memory_space<vmem>>, vector<1x16x128xf32>
    %106 = vector.shape_cast %105 : vector<1x16x128xf32> to vector<16x128xf32>
    %107 = vector.shape_cast %104 : vector<16x128xf32> to vector<1x16x128xf32>
    tpu.vector_store %arg3[%c1_131, %c0_132, %c0_133], %107 {strides = array<i32>} : memref<2x16x128xf32, #tpu.memory_space<vmem>>, vector<1x16x128xf32>,
    return
  }
  func.func @transform_0(%arg0: i32) -> (i32, i32, i32) {
    %c0_i32 = arith.constant 0 : i32
    %c0_i32_0 = arith.constant 0 : i32
    %c0_i32_1 = arith.constant 0 : i32
    return %arg0, %c0_i32, %c0_i32_0 : i32, i32, i32
  }
  func.func @transform_1(%arg0: i32) -> (i32, i32, i32, i32) {
    %c0_i32 = arith.constant 0 : i32
    %c0_i32_0 = arith.constant 0 : i32
    %c0_i32_1 = arith.constant 0 : i32
    %c0_i32_2 = arith.constant 0 : i32
    %c0_i32_3 = arith.constant 0 : i32
    return %c0_i32, %c0_i32_0, %c0_i32_1, %c0_i32_2 : i32, i32, i32, i32
  }
  func.func @transform_2(%arg0: i32) -> (i32, i32, i32) {
    %c0_i32 = arith.constant 0 : i32
    %c0_i32_0 = arith.constant 0 : i32
    %c0_i32_1 = arith.constant 0 : i32
    return %arg0, %c0_i32, %c0_i32_0 : i32, i32, i32
  }
}

</mosaic_0001>

<llo_original>
// kernel: tpu_custom_call.1
$region0: #{tpu_custom_call.1}
  #allocation0 [shape = 'u32[]', space=smem, size = 0x4, offset = 0x4, fixed_abs, tag = 'smem constant byte address 0x4 - core index']
  #allocation1 [shape = 'u32[72,128]{1,0:T(1,128)}', space=vmem, size = 0x9000, scoped, tag = 'internal scratch']
  #allocation2 [shape = 'f32[56,128]{1,0:T(8,128)}', space=vmem, size = 0x7000, scoped, tag = 'scratch operand']
  #allocation3 [shape = 'bf16[56,128]{1,0:T(8,128)(2,1)}', space=vmem, size = 0x3800, scoped, tag = 'scratch operand']
  %s0 = inlined_call_operand.hbm [shape: f32[2,16,64], index: 0, kind: input, shape index: {}]
  %s1 = inlined_call_operand.hbm [shape: bf16[3,3,128,128], index: 1, kind: input, shape index: {}]
  %s2 = inlined_call_operand.hbm [shape: f32[2,16,128], index: 2, kind: output, shape index: {}]
  %s3 = sld [smem:[#allocation0]]
  $region26: #{tpu_custom_call.1} parent=0
    _
  %s5 = ssub.s32 1, %s3
  %s6 = scalar_select 0, %s5, %s3
  $region1: #{tpu_custom_call.1} parent=0
    #allocation4 [shape = 'u8[16384]{0}', space=vmem, size = 0x4000, scoped, tag = 'input window, operand 0, single buffered']
    #allocation5 [shape = 's32[1]{0}', space=sflag, size = 0x4, scoped, tag = 'scoped memory for tpu_custom_call.1']
    #allocation6 [shape = 's32[1]{0}', space=sflag, size = 0x4, scoped, tag = 'scoped memory for tpu_custom_call.1']
    #allocation7 [shape = 'u8[294912]{0}', space=vmem, size = 0x48000, scoped, tag = 'input window, operand 1, single buffered']
    #allocation8 [shape = 's32[1]{0}', space=sflag, size = 0x4, scoped, tag = 'scoped memory for tpu_custom_call.1']
    #allocation9 [shape = 'u8[16384]{0}', space=vmem, size = 0x4000, scoped, tag = 'output window, operand 0, single buffered']
    %7 = vsyncpa [#allocation5], 0
    %8 = vsyncpa [#allocation8], 0
    %9 = vsyncpa [#allocation6], 0
    // Predicated region
    $region2: #{tpu_custom_call.1} parent=1 // pred_check
      _
    $region3: #{tpu_custom_call.1} parent=1 // pred_check_branch
      %11 = sbr.rel (0) target = $region5
    $region4: #{tpu_custom_call.1} parent=1 // pred_region
      %13 = vsyncadd [#allocation5], 0
      %s14 = sshll.u32 %s0, 4
      %s15 = int_to_ptr.hbm [resolvable:$true] %s14
      %s16 = sshll.u32 [#allocation4], 4
      %s17 = int_to_ptr.vmem [resolvable:$true] %s16
      %22 = dma.hbm_to_vmem [thread:$0]  %s15, 512, %s17, [#allocation5], 128, 128, 8
    $region5: #{tpu_custom_call.1} parent=1 // pred_fallthru
      _
    // Predicated region
    $region6: #{tpu_custom_call.1} parent=1 // pred_check
      _
    $region7: #{tpu_custom_call.1} parent=1 // pred_check_branch
      %24 = sbr.rel (0) target = $region9
    $region8: #{tpu_custom_call.1} parent=1 // pred_region
      %26 = vsyncadd [#allocation8], 0
      %s27 = sshll.u32 %s1, 4
      %s28 = int_to_ptr.hbm [resolvable:$true] %s27
      %s29 = sshll.u32 [#allocation7], 4
      %s30 = int_to_ptr.vmem [resolvable:$true] %s29
      %35 = dma.hbm_to_vmem [thread:$0]  %s28, 9216, %s30, [#allocation8], 64, 64, 4
    $region9: #{tpu_custom_call.1} parent=1 // pred_fallthru
      _
    // Predicated region
    $region10: #{tpu_custom_call.1} parent=1 // pred_check
      _
    $region11: #{tpu_custom_call.1} parent=1 // pred_check_branch
      %37 = sbr.rel (0) target = $region13
    $region12: #{tpu_custom_call.1} parent=1 // pred_region
      %39 = dma.done [#allocation5], 512
    $region13: #{tpu_custom_call.1} parent=1 // pred_fallthru
      _
    // Predicated region
    $region14: #{tpu_custom_call.1} parent=1 // pred_check
      _
    $region15: #{tpu_custom_call.1} parent=1 // pred_check_branch
      %41 = sbr.rel (0) target = $region17
    $region16: #{tpu_custom_call.1} parent=1 // pred_region
      %43 = dma.done [#allocation8], 9216
    $region17: #{tpu_custom_call.1} parent=1 // pred_fallthru
      _
    %45 = vst [vmem:[#allocation2] sm:$0xff] 0.0
    %46 = vst [vmem:[#allocation3] sm:$0xf] 0
    %47 = vst [vmem:[#allocation2 + $0x18] sm:$0xff] 0.0
    %48 = vst [vmem:[#allocation3 + $0xc] sm:$0xf] 0
    %49 = vst [vmem:[#allocation2 + $0x30] sm:$0xff] 0.0
    %50 = vst [vmem:[#allocation3 + $0x18] sm:$0xf] 0
    %v51 = vld [vmem:[#allocation4] sm:$0xff]
    %v52 = vld [vmem:[#allocation4 + $0x8] sm:$0xff]
    %vm53 = vcmask 523264
    %54 = vst.msk [vmem:[#allocation2 + $0x8] sm:$0xff] %vm53, %v51
    %55 = vst.msk [vmem:[#allocation2 + $0x10] sm:$0xff] %vm53, %v52
    %58 = vrot.lane.b32.xlu0 %v51, 64
    %v59 = vpop.permute.xlu0 %58
    %60 = vrot.lane.b32.xlu0 %v52, 64
    %v61 = vpop.permute.xlu0 %60
    %vm64 = vcmask 1048064
    %65 = vst.msk [vmem:[#allocation2 + $0x8] sm:$0xff] %vm64, %v59
    %66 = vst.msk [vmem:[#allocation2 + $0x10] sm:$0xff] %vm64, %v61
    %v67 = vpack.c.bf16 %v51, %v51
    %v68 = vpack.c.bf16 %v52, %v52
    %vm69 = vcmask 519168
    %70 = vst.msk [vmem:[#allocation3 + $0x4] sm:$0xf] %vm69, %v67
    %71 = vst.msk [vmem:[#allocation3 + $0x8] sm:$0xf] %vm69, %v68
    %74 = vrot.lane.b32.xlu0 %v67, 64
    %v75 = vpop.permute.xlu0 %74
    %76 = vrot.lane.b32.xlu0 %v68, 64
    %v77 = vpop.permute.xlu0 %76
    %vm80 = vcmask 1043968
    %81 = vst.msk [vmem:[#allocation3 + $0x4] sm:$0xf] %vm80, %v75
    %82 = vst.msk [vmem:[#allocation3 + $0x8] sm:$0xf] %vm80, %v77
    %s83 = scalar_lea.vmem [#allocation4], 16
    %v84 = vld [vmem:[%s83] sm:$0xff]
    %v85 = vld [vmem:[%s83 + $0x8] sm:$0xff]
    %86 = vst.msk [vmem:[#allocation2 + $0x20] sm:$0xff] %vm53, %v84
    %87 = vst.msk [vmem:[#allocation2 + $0x28] sm:$0xff] %vm53, %v85
    %90 = vrot.lane.b32.xlu0 %v84, 64
    %v91 = vpop.permute.xlu0 %90
    %92 = vrot.lane.b32.xlu0 %v85, 64
    %v93 = vpop.permute.xlu0 %92
    %96 = vst.msk [vmem:[#allocation2 + $0x20] sm:$0xff] %vm64, %v91
    %97 = vst.msk [vmem:[#allocation2 + $0x28] sm:$0xff] %vm64, %v93
    %v98 = vpack.c.bf16 %v84, %v84
    %v99 = vpack.c.bf16 %v85, %v85
    %100 = vst.msk [vmem:[#allocation3 + $0x10] sm:$0xf] %vm69, %v98
    %101 = vst.msk [vmem:[#allocation3 + $0x14] sm:$0xf] %vm69, %v99
    %104 = vrot.lane.b32.xlu0 %v98, 64
    %v105 = vpop.permute.xlu0 %104
    %106 = vrot.lane.b32.xlu0 %v99, 64
    %v107 = vpop.permute.xlu0 %106
    %110 = vst.msk [vmem:[#allocation3 + $0x10] sm:$0xf] %vm80, %v105
    %111 = vst.msk [vmem:[#allocation3 + $0x14] sm:$0xf] %vm80, %v107
    %v112 = vld [vmem:[#allocation3] sm:$0x8]
    %v113 = vld [vmem:[#allocation3 + $0x4] sm:$0xf]
    %v114 = vld [vmem:[#allocation3 + $0x8] sm:$0xf]
    %v115 = vld [vmem:[#allocation3 + $0xc] sm:$0xf]
    %v116 = vld [vmem:[#allocation3 + $0x10] sm:$0xf]
    %v117 = vld [vmem:[#allocation3 + $0x14] sm:$0xf]
    %v118 = vld [vmem:[#allocation7] sm:$0xf]
    %v119 = vld [vmem:[#allocation7 + $0x4] sm:$0xf]
    %v120 = vld [vmem:[#allocation7 + $0x8] sm:$0xf]
    %v121 = vld [vmem:[#allocation7 + $0xc] sm:$0xf]
    %v122 = vld [vmem:[#allocation7 + $0x10] sm:$0xf]
    %v123 = vld [vmem:[#allocation7 + $0x14] sm:$0xf]
    %v124 = vld [vmem:[#allocation7 + $0x18] sm:$0xf]
    %v125 = vld [vmem:[#allocation7 + $0x1c] sm:$0xf]
    %v126 = vld [vmem:[#allocation7 + $0x20] sm:$0xf]
    %v127 = vld [vmem:[#allocation7 + $0x24] sm:$0xf]
    %v128 = vld [vmem:[#allocation7 + $0x28] sm:$0xf]
    %v129 = vld [vmem:[#allocation7 + $0x2c] sm:$0xf]
    %v130 = vld [vmem:[#allocation7 + $0x30] sm:$0xf]
    %v131 = vld [vmem:[#allocation7 + $0x34] sm:$0xf]
    %v132 = vld [vmem:[#allocation7 + $0x38] sm:$0xf]
    %v133 = vld [vmem:[#allocation7 + $0x3c] sm:$0xf]
    %s134 = scalar_lea.vmem [#allocation7], 64
    %v135 = vld [vmem:[%s134] sm:$0xf]
    %v136 = vld [vmem:[%s134 + $0x4] sm:$0xf]
    %v137 = vld [vmem:[%s134 + $0x8] sm:$0xf]
    %v138 = vld [vmem:[%s134 + $0xc] sm:$0xf]
    %v139 = vld [vmem:[%s134 + $0x10] sm:$0xf]
    %v140 = vld [vmem:[%s134 + $0x14] sm:$0xf]
    %v141 = vld [vmem:[%s134 + $0x18] sm:$0xf]
    %v142 = vld [vmem:[%s134 + $0x1c] sm:$0xf]
    %v143 = vld [vmem:[%s134 + $0x20] sm:$0xf]
    %v144 = vld [vmem:[%s134 + $0x24] sm:$0xf]
    %v145 = vld [vmem:[%s134 + $0x28] sm:$0xf]
    %v146 = vld [vmem:[%s134 + $0x2c] sm:$0xf]
    %v147 = vld [vmem:[%s134 + $0x30] sm:$0xf]
    %v148 = vld [vmem:[%s134 + $0x34] sm:$0xf]
    %v149 = vld [vmem:[%s134 + $0x38] sm:$0xf]
    %v150 = vld [vmem:[%s134 + $0x3c] sm:$0xf]
    %v156 = vunpack.c.l.b16 %v113
    %v157 = vunpack.c.l.b16 %v114
    %v158 = vunpack.c.l.b16 %v115
    %v159 = vunpack.c.l.b16 %v116
    %v160 = vunpack.c.l.b16 %v117
    %v161 = vpack.c.b16 %v157, %v156
    %v162 = vpack.c.b16 %v159, %v158
    %v163 = vpack.c.b16 %v160, %v160
    %v183 = vunpack.c.l.b16 %v135
    %v184 = vunpack.c.l.b16 %v136
    %v185 = vunpack.c.l.b16 %v137
    %v186 = vunpack.c.l.b16 %v138
    %v187 = vunpack.c.l.b16 %v139
    %v188 = vunpack.c.l.b16 %v140
    %v189 = vunpack.c.l.b16 %v141
    %v190 = vunpack.c.l.b16 %v142
    %v191 = vunpack.c.l.b16 %v143
    %v192 = vunpack.c.l.b16 %v144
    %v193 = vunpack.c.l.b16 %v145
    %v194 = vunpack.c.l.b16 %v146
    %v195 = vunpack.c.l.b16 %v147
    %v196 = vunpack.c.l.b16 %v148
    %v197 = vunpack.c.l.b16 %v149
    %v198 = vunpack.c.l.b16 %v150
    %v199 = vpack.c.b16 %v184, %v183
    %v200 = vpack.c.b16 %v186, %v185
    %v201 = vpack.c.b16 %v188, %v187
    %v202 = vpack.c.b16 %v190, %v189
    %v203 = vpack.c.b16 %v192, %v191
    %v204 = vpack.c.b16 %v194, %v193
    %v205 = vpack.c.b16 %v196, %v195
    %v206 = vpack.c.b16 %v198, %v197
    %215 = vmatpush.bf16.msra.mxu0 %v206
    %216 = vmatpush.bf16.msra.mxu0 %v205
    %217 = vmatpush.bf16.msra.mxu0 %v204
    %218 = vmatpush.bf16.msra.mxu0 %v203
    %219 = vmatpush.bf16.msra.mxu0 %v202
    %220 = vmatpush.bf16.msra.mxu0 %v201
    %221 = vmatpush.bf16.msra.mxu0 %v200
    %222 = vmatpush.bf16.msra.mxu0 %v199
    %223 = vmatmul.bf16.gmra.mxu0 %v161
    %v224 = vpop.f32.mrf.mxu0
    %v225 = vadd.f32 0.0, %v224
    %v226 = vpop.f32.mrf.mxu0
    %v227 = vadd.f32 0.0, %v226
    %228 = vmatmul.bf16.gmra.mxu0 %v162
    %v229 = vpop.f32.mrf.mxu0
    %v230 = vpop.f32.mrf.mxu0
    %v231 = vadd.f32 0.0, %v230
    %232 = vmatmul.bf16.gmra.mxu0 %v163
    %v233 = vpop.f32.mrf.mxu0
    %v234 = vadd.f32 0.0, %v233
    %v235 = vpop.f32.mrf.mxu0
    %236 = vdwg.mxu0
    %v238 = vunpack.c.l.b16 %v112
    %v239 = vpack.c.b16 %v156, %v238
    %v240 = vpack.c.b16 %v158, %v157
    %v241 = vpack.c.b16 %v160, %v159
    %vm242 = vsmask.f32 4352
    %v244 = vshrl.u32 %v239, 16
    %v246 = vrot.slane %v244, 3
    %v247 = vshll.u32 %v239, 16
    %v249 = vrot.slane %v247, 4
    %v250 = vor.u32 %v246, %v249
    %v252 = vshrl.u32 %v240, 16
    %v254 = vrot.slane %v252, 3
    %v255 = vshll.u32 %v240, 16
    %v257 = vrot.slane %v255, 4
    %v258 = vor.u32 %v254, %v257
    %v259 = vsel %vm242, %v250, %v258
    %v261 = vshrl.u32 %v241, 16
    %v263 = vrot.slane %v261, 3
    %v264 = vshll.u32 %v241, 16
    %v266 = vrot.slane %v264, 4
    %v267 = vor.u32 %v263, %v266
    %v268 = vsel %vm242, %v258, %v267
    %v288 = vunpack.c.l.b16 %v118
    %v289 = vunpack.c.l.b16 %v119
    %v290 = vunpack.c.l.b16 %v120
    %v291 = vunpack.c.l.b16 %v121
    %v292 = vunpack.c.l.b16 %v122
    %v293 = vunpack.c.l.b16 %v123
    %v294 = vunpack.c.l.b16 %v124
    %v295 = vunpack.c.l.b16 %v125
    %v296 = vunpack.c.l.b16 %v126
    %v297 = vunpack.c.l.b16 %v127
    %v298 = vunpack.c.l.b16 %v128
    %v299 = vunpack.c.l.b16 %v129
    %v300 = vunpack.c.l.b16 %v130
    %v301 = vunpack.c.l.b16 %v131
    %v302 = vunpack.c.l.b16 %v132
    %v303 = vunpack.c.l.b16 %v133
    %v304 = vpack.c.b16 %v289, %v288
    %v305 = vpack.c.b16 %v291, %v290
    %v306 = vpack.c.b16 %v293, %v292
    %v307 = vpack.c.b16 %v295, %v294
    %v308 = vpack.c.b16 %v297, %v296
    %v309 = vpack.c.b16 %v299, %v298
    %v310 = vpack.c.b16 %v301, %v300
    %v311 = vpack.c.b16 %v303, %v302
    %320 = vmatpush.bf16.msra.mxu0 %v311
    %321 = vmatpush.bf16.msra.mxu0 %v310
    %322 = vmatpush.bf16.msra.mxu0 %v309
    %323 = vmatpush.bf16.msra.mxu0 %v308
    %324 = vmatpush.bf16.msra.mxu0 %v307
    %325 = vmatpush.bf16.msra.mxu0 %v306
    %326 = vmatpush.bf16.msra.mxu0 %v305
    %327 = vmatpush.bf16.msra.mxu0 %v304
    %328 = vmatmul.bf16.gmra.mxu0 %v259
    %v329 = vpop.f32.mrf.mxu0
    %v330 = vadd.f32 %v225, %v329
    %v331 = vpop.f32.mrf.mxu0
    %v332 = vadd.f32 %v227, %v331
    %333 = vmatmul.bf16.gmra.mxu0 %v268
    %v334 = vpop.f32.mrf.mxu0
    %v335 = vpop.f32.mrf.mxu0
    %v336 = vadd.f32 %v231, %v335
    %337 = vmatmul.bf16.gmra.mxu0 %v267
    %v338 = vpop.f32.mrf.mxu0
    %v339 = vadd.f32 %v234, %v338
    %v340 = vpop.f32.mrf.mxu0
    %341 = vdwg.mxu0
    %v342 = vld [vmem:[#allocation3 + $0x4] sm:$0xf]
    %v343 = vld [vmem:[#allocation3 + $0x8] sm:$0xf]
    %v344 = vld [vmem:[#allocation3 + $0xc] sm:$0xf]
    %v345 = vld [vmem:[#allocation3 + $0x10] sm:$0xf]
    %v346 = vld [vmem:[#allocation3 + $0x14] sm:$0xf]
    %v347 = vld [vmem:[#allocation3 + $0x18] sm:$0x1]
    %s348 = scalar_lea.vmem [#allocation7], 128
    %v349 = vld [vmem:[%s348] sm:$0xf]
    %v350 = vld [vmem:[%s348 + $0x4] sm:$0xf]
    %v351 = vld [vmem:[%s348 + $0x8] sm:$0xf]
    %v352 = vld [vmem:[%s348 + $0xc] sm:$0xf]
    %v353 = vld [vmem:[%s348 + $0x10] sm:$0xf]
    %v354 = vld [vmem:[%s348 + $0x14] sm:$0xf]
    %v355 = vld [vmem:[%s348 + $0x18] sm:$0xf]
    %v356 = vld [vmem:[%s348 + $0x1c] sm:$0xf]
    %v357 = vld [vmem:[%s348 + $0x20] sm:$0xf]
    %v358 = vld [vmem:[%s348 + $0x24] sm:$0xf]
    %v359 = vld [vmem:[%s348 + $0x28] sm:$0xf]
    %v360 = vld [vmem:[%s348 + $0x2c] sm:$0xf]
    %v361 = vld [vmem:[%s348 + $0x30] sm:$0xf]
    %v362 = vld [vmem:[%s348 + $0x34] sm:$0xf]
    %v363 = vld [vmem:[%s348 + $0x38] sm:$0xf]
    %v364 = vld [vmem:[%s348 + $0x3c] sm:$0xf]
    %v371 = vunpack.c.l.b16 %v342
    %v372 = vunpack.c.l.b16 %v343
    %v373 = vunpack.c.l.b16 %v344
    %v374 = vunpack.c.l.b16 %v345
    %v375 = vunpack.c.l.b16 %v346
    %v376 = vunpack.c.l.b16 %v347
    %v377 = vpack.c.b16 %v372, %v371
    %v378 = vpack.c.b16 %v374, %v373
    %v379 = vpack.c.b16 %v376, %v375
    %vm380 = vsmask.f32 7424
    %v382 = vshrl.u32 %v377, 16
    %v384 = vshll.u32 %v377, 16
    %v386 = vrot.slane %v384, 1
    %v387 = vor.u32 %v382, %v386
    %v389 = vshll.u32 %v378, 16
    %v391 = vrot.slane %v389, 1
    %v392 = vsel %vm380, %v387, %v391
    %v393 = vshrl.u32 %v378, 16
    %v395 = vor.u32 %v393, %v391
    %v397 = vshll.u32 %v379, 16
    %v399 = vrot.slane %v397, 1
    %v400 = vsel %vm380, %v395, %v399
    %v401 = vshrl.u32 %v379, 16
    %v403 = vor.u32 %v401, %v399
    %v423 = vunpack.c.l.b16 %v349
    %v424 = vunpack.c.l.b16 %v350
    %v425 = vunpack.c.l.b16 %v351
    %v426 = vunpack.c.l.b16 %v352
    %v427 = vunpack.c.l.b16 %v353
    %v428 = vunpack.c.l.b16 %v354
    %v429 = vunpack.c.l.b16 %v355
    %v430 = vunpack.c.l.b16 %v356
    %v431 = vunpack.c.l.b16 %v357
    %v432 = vunpack.c.l.b16 %v358
    %v433 = vunpack.c.l.b16 %v359
    %v434 = vunpack.c.l.b16 %v360
    %v435 = vunpack.c.l.b16 %v361
    %v436 = vunpack.c.l.b16 %v362
    %v437 = vunpack.c.l.b16 %v363
    %v438 = vunpack.c.l.b16 %v364
    %v439 = vpack.c.b16 %v424, %v423
    %v440 = vpack.c.b16 %v426, %v425
    %v441 = vpack.c.b16 %v428, %v427
    %v442 = vpack.c.b16 %v430, %v429
    %v443 = vpack.c.b16 %v432, %v431
    %v444 = vpack.c.b16 %v434, %v433
    %v445 = vpack.c.b16 %v436, %v435
    %v446 = vpack.c.b16 %v438, %v437
    %455 = vmatpush.bf16.msra.mxu0 %v446
    %456 = vmatpush.bf16.msra.mxu0 %v445
    %457 = vmatpush.bf16.msra.mxu0 %v444
    %458 = vmatpush.bf16.msra.mxu0 %v443
    %459 = vmatpush.bf16.msra.mxu0 %v442
    %460 = vmatpush.bf16.msra.mxu0 %v441
    %461 = vmatpush.bf16.msra.mxu0 %v440
    %462 = vmatpush.bf16.msra.mxu0 %v439
    %463 = vmatmul.bf16.gmra.mxu0 %v392
    %v464 = vpop.f32.mrf.mxu0
    %v465 = vadd.f32 0.0, %v464
    %v466 = vpop.f32.mrf.mxu0
    %v467 = vadd.f32 0.0, %v466
    %468 = vmatmul.bf16.gmra.mxu0 %v400
    %v469 = vpop.f32.mrf.mxu0
    %v470 = vpop.f32.mrf.mxu0
    %v471 = vadd.f32 0.0, %v470
    %472 = vmatmul.bf16.gmra.mxu0 %v403
    %v473 = vpop.f32.mrf.mxu0
    %v474 = vadd.f32 0.0, %v473
    %v475 = vpop.f32.mrf.mxu0
    %476 = vdwg.mxu0
    %v477 = vadd.f32 %v330, %v465
    %v478 = vadd.f32 %v332, %v467
    %v479 = vadd.f32 %v336, %v471
    %v480 = vadd.f32 %v339, %v474
    %v481 = vld [vmem:[#allocation2 + $0x8] sm:$0xff]
    %v482 = vld [vmem:[#allocation2 + $0x10] sm:$0xff]
    %v483 = vadd.f32 %v481, %v477
    %v484 = vadd.f32 %v482, %v478
    %485 = vst [vmem:[#allocation2 + $0x8] sm:$0xff] %v483
    %486 = vst [vmem:[#allocation2 + $0x10] sm:$0xff] %v484
    %v487 = vpack.c.bf16 %v483, %v483
    %v488 = vpack.c.bf16 %v484, %v484
    %489 = vst [vmem:[#allocation3 + $0x4] sm:$0xf] %v487
    %490 = vst [vmem:[#allocation3 + $0x8] sm:$0xf] %v488
    %v491 = vld [vmem:[#allocation2 + $0x20] sm:$0xff]
    %v492 = vld [vmem:[#allocation2 + $0x28] sm:$0xff]
    %v493 = vadd.f32 %v491, %v479
    %v494 = vadd.f32 %v492, %v480
    %495 = vst [vmem:[#allocation2 + $0x20] sm:$0xff] %v493
    %496 = vst [vmem:[#allocation2 + $0x28] sm:$0xff] %v494
    %v497 = vpack.c.bf16 %v493, %v493
    %v498 = vpack.c.bf16 %v494, %v494
    %499 = vst [vmem:[#allocation3 + $0x10] sm:$0xf] %v497
    %500 = vst [vmem:[#allocation3 + $0x14] sm:$0xf] %v498
    %v501 = vld [vmem:[#allocation3] sm:$0x8]
    %v502 = vld [vmem:[#allocation3 + $0x4] sm:$0xf]
    %v503 = vld [vmem:[#allocation3 + $0x8] sm:$0xf]
    %v504 = vld [vmem:[#allocation3 + $0xc] sm:$0xf]
    %v505 = vld [vmem:[#allocation3 + $0x10] sm:$0xf]
    %v506 = vld [vmem:[#allocation3 + $0x14] sm:$0xf]
    %s507 = scalar_lea.vmem [#allocation7], 192
    %v508 = vld [vmem:[%s507] sm:$0xf]
    %v509 = vld [vmem:[%s507 + $0x4] sm:$0xf]
    %v510 = vld [vmem:[%s507 + $0x8] sm:$0xf]
    %v511 = vld [vmem:[%s507 + $0xc] sm:$0xf]
    %v512 = vld [vmem:[%s507 + $0x10] sm:$0xf]
    %v513 = vld [vmem:[%s507 + $0x14] sm:$0xf]
    %v514 = vld [vmem:[%s507 + $0x18] sm:$0xf]
    %v515 = vld [vmem:[%s507 + $0x1c] sm:$0xf]
    %v516 = vld [vmem:[%s507 + $0x20] sm:$0xf]
    %v517 = vld [vmem:[%s507 + $0x24] sm:$0xf]
    %v518 = vld [vmem:[%s507 + $0x28] sm:$0xf]
    %v519 = vld [vmem:[%s507 + $0x2c] sm:$0xf]
    %v520 = vld [vmem:[%s507 + $0x30] sm:$0xf]
    %v521 = vld [vmem:[%s507 + $0x34] sm:$0xf]
    %v522 = vld [vmem:[%s507 + $0x38] sm:$0xf]
    %v523 = vld [vmem:[%s507 + $0x3c] sm:$0xf]
    %s524 = scalar_lea.vmem [#allocation7], 256
    %v525 = vld [vmem:[%s524] sm:$0xf]
    %v526 = vld [vmem:[%s524 + $0x4] sm:$0xf]
    %v527 = vld [vmem:[%s524 + $0x8] sm:$0xf]
    %v528 = vld [vmem:[%s524 + $0xc] sm:$0xf]
    %v529 = vld [vmem:[%s524 + $0x10] sm:$0xf]
    %v530 = vld [vmem:[%s524 + $0x14] sm:$0xf]
    %v531 = vld [vmem:[%s524 + $0x18] sm:$0xf]
    %v532 = vld [vmem:[%s524 + $0x1c] sm:$0xf]
    %v533 = vld [vmem:[%s524 + $0x20] sm:$0xf]
    %v534 = vld [vmem:[%s524 + $0x24] sm:$0xf]
    %v535 = vld [vmem:[%s524 + $0x28] sm:$0xf]
    %v536 = vld [vmem:[%s524 + $0x2c] sm:$0xf]
    %v537 = vld [vmem:[%s524 + $0x30] sm:$0xf]
    %v538 = vld [vmem:[%s524 + $0x34] sm:$0xf]
    %v539 = vld [vmem:[%s524 + $0x38] sm:$0xf]
    %v540 = vld [vmem:[%s524 + $0x3c] sm:$0xf]
    %v546 = vunpack.c.l.b16 %v502
    %v547 = vunpack.c.l.b16 %v503
    %v548 = vunpack.c.l.b16 %v504
    %v549 = vunpack.c.l.b16 %v505
    %v550 = vunpack.c.l.b16 %v506
    %v551 = vpack.c.b16 %v547, %v546
    %v552 = vpack.c.b16 %v549, %v548
    %v553 = vpack.c.b16 %v550, %v550
    %v573 = vunpack.c.l.b16 %v525
    %v574 = vunpack.c.l.b16 %v526
    %v575 = vunpack.c.l.b16 %v527
    %v576 = vunpack.c.l.b16 %v528
    %v577 = vunpack.c.l.b16 %v529
    %v578 = vunpack.c.l.b16 %v530
    %v579 = vunpack.c.l.b16 %v531
    %v580 = vunpack.c.l.b16 %v532
    %v581 = vunpack.c.l.b16 %v533
    %v582 = vunpack.c.l.b16 %v534
    %v583 = vunpack.c.l.b16 %v535
    %v584 = vunpack.c.l.b16 %v536
    %v585 = vunpack.c.l.b16 %v537
    %v586 = vunpack.c.l.b16 %v538
    %v587 = vunpack.c.l.b16 %v539
    %v588 = vunpack.c.l.b16 %v540
    %v589 = vpack.c.b16 %v574, %v573
    %v590 = vpack.c.b16 %v576, %v575
    %v591 = vpack.c.b16 %v578, %v577
    %v592 = vpack.c.b16 %v580, %v579
    %v593 = vpack.c.b16 %v582, %v581
    %v594 = vpack.c.b16 %v584, %v583
    %v595 = vpack.c.b16 %v586, %v585
    %v596 = vpack.c.b16 %v588, %v587
    %605 = vmatpush.bf16.msra.mxu0 %v596
    %606 = vmatpush.bf16.msra.mxu0 %v595
    %607 = vmatpush.bf16.msra.mxu0 %v594
    %608 = vmatpush.bf16.msra.mxu0 %v593
    %609 = vmatpush.bf16.msra.mxu0 %v592
    %610 = vmatpush.bf16.msra.mxu0 %v591
    %611 = vmatpush.bf16.msra.mxu0 %v590
    %612 = vmatpush.bf16.msra.mxu0 %v589
    %613 = vmatmul.bf16.gmra.mxu0 %v551
    %v614 = vpop.f32.mrf.mxu0
    %v615 = vadd.f32 0.0, %v614
    %v616 = vpop.f32.mrf.mxu0
    %v617 = vadd.f32 0.0, %v616
    %618 = vmatmul.bf16.gmra.mxu0 %v552
    %v619 = vpop.f32.mrf.mxu0
    %v620 = vpop.f32.mrf.mxu0
    %v621 = vadd.f32 0.0, %v620
    %622 = vmatmul.bf16.gmra.mxu0 %v553
    %v623 = vpop.f32.mrf.mxu0
    %v624 = vadd.f32 0.0, %v623
    %v625 = vpop.f32.mrf.mxu0
    %626 = vdwg.mxu0
    %v628 = vunpack.c.l.b16 %v501
    %v629 = vpack.c.b16 %v546, %v628
    %v630 = vpack.c.b16 %v548, %v547
    %v631 = vpack.c.b16 %v550, %v549
    %v633 = vshrl.u32 %v629, 16
    %v635 = vrot.slane %v633, 3
    %v636 = vshll.u32 %v629, 16
    %v638 = vrot.slane %v636, 4
    %v639 = vor.u32 %v635, %v638
    %v641 = vshrl.u32 %v630, 16
    %v643 = vrot.slane %v641, 3
    %v644 = vshll.u32 %v630, 16
    %v646 = vrot.slane %v644, 4
    %v647 = vor.u32 %v643, %v646
    %v648 = vsel %vm242, %v639, %v647
    %v650 = vshrl.u32 %v631, 16
    %v652 = vrot.slane %v650, 3
    %v653 = vshll.u32 %v631, 16
    %v655 = vrot.slane %v653, 4
    %v656 = vor.u32 %v652, %v655
    %v657 = vsel %vm242, %v647, %v656
    %v677 = vunpack.c.l.b16 %v508
    %v678 = vunpack.c.l.b16 %v509
    %v679 = vunpack.c.l.b16 %v510
    %v680 = vunpack.c.l.b16 %v511
    %v681 = vunpack.c.l.b16 %v512
    %v682 = vunpack.c.l.b16 %v513
    %v683 = vunpack.c.l.b16 %v514
    %v684 = vunpack.c.l.b16 %v515
    %v685 = vunpack.c.l.b16 %v516
    %v686 = vunpack.c.l.b16 %v517
    %v687 = vunpack.c.l.b16 %v518
    %v688 = vunpack.c.l.b16 %v519
    %v689 = vunpack.c.l.b16 %v520
    %v690 = vunpack.c.l.b16 %v521
    %v691 = vunpack.c.l.b16 %v522
    %v692 = vunpack.c.l.b16 %v523
    %v693 = vpack.c.b16 %v678, %v677
    %v694 = vpack.c.b16 %v680, %v679
    %v695 = vpack.c.b16 %v682, %v681
    %v696 = vpack.c.b16 %v684, %v683
    %v697 = vpack.c.b16 %v686, %v685
    %v698 = vpack.c.b16 %v688, %v687
    %v699 = vpack.c.b16 %v690, %v689
    %v700 = vpack.c.b16 %v692, %v691
    %709 = vmatpush.bf16.msra.mxu0 %v700
    %710 = vmatpush.bf16.msra.mxu0 %v699
    %711 = vmatpush.bf16.msra.mxu0 %v698
    %712 = vmatpush.bf16.msra.mxu0 %v697
    %713 = vmatpush.bf16.msra.mxu0 %v696
    %714 = vmatpush.bf16.msra.mxu0 %v695
    %715 = vmatpush.bf16.msra.mxu0 %v694
    %716 = vmatpush.bf16.msra.mxu0 %v693
    %717 = vmatmul.bf16.gmra.mxu0 %v648
    %v718 = vpop.f32.mrf.mxu0
    %v719 = vadd.f32 %v615, %v718
    %v720 = vpop.f32.mrf.mxu0
    %v721 = vadd.f32 %v617, %v720
    %722 = vmatmul.bf16.gmra.mxu0 %v657
    %v723 = vpop.f32.mrf.mxu0
    %v724 = vpop.f32.mrf.mxu0
    %v725 = vadd.f32 %v621, %v724
    %726 = vmatmul.bf16.gmra.mxu0 %v656
    %v727 = vpop.f32.mrf.mxu0
    %v728 = vadd.f32 %v624, %v727
    %v729 = vpop.f32.mrf.mxu0
    %730 = vdwg.mxu0
    %v731 = vld [vmem:[#allocation3 + $0x4] sm:$0xf]
    %v732 = vld [vmem:[#allocation3 + $0x8] sm:$0xf]
    %v733 = vld [vmem:[#allocation3 + $0xc] sm:$0xf]
    %v734 = vld [vmem:[#allocation3 + $0x10] sm:$0xf]
    %v735 = vld [vmem:[#allocation3 + $0x14] sm:$0xf]
    %v736 = vld [vmem:[#allocation3 + $0x18] sm:$0x1]
    %s737 = scalar_lea.vmem [#allocation7], 320
    %v738 = vld [vmem:[%s737] sm:$0xf]
    %v739 = vld [vmem:[%s737 + $0x4] sm:$0xf]
    %v740 = vld [vmem:[%s737 + $0x8] sm:$0xf]
    %v741 = vld [vmem:[%s737 + $0xc] sm:$0xf]
    %v742 = vld [vmem:[%s737 + $0x10] sm:$0xf]
    %v743 = vld [vmem:[%s737 + $0x14] sm:$0xf]
    %v744 = vld [vmem:[%s737 + $0x18] sm:$0xf]
    %v745 = vld [vmem:[%s737 + $0x1c] sm:$0xf]
    %v746 = vld [vmem:[%s737 + $0x20] sm:$0xf]
    %v747 = vld [vmem:[%s737 + $0x24] sm:$0xf]
    %v748 = vld [vmem:[%s737 + $0x28] sm:$0xf]
    %v749 = vld [vmem:[%s737 + $0x2c] sm:$0xf]
    %v750 = vld [vmem:[%s737 + $0x30] sm:$0xf]
    %v751 = vld [vmem:[%s737 + $0x34] sm:$0xf]
    %v752 = vld [vmem:[%s737 + $0x38] sm:$0xf]
    %v753 = vld [vmem:[%s737 + $0x3c] sm:$0xf]
    %v760 = vunpack.c.l.b16 %v731
    %v761 = vunpack.c.l.b16 %v732
    %v762 = vunpack.c.l.b16 %v733
    %v763 = vunpack.c.l.b16 %v734
    %v764 = vunpack.c.l.b16 %v735
    %v765 = vunpack.c.l.b16 %v736
    %v766 = vpack.c.b16 %v761, %v760
    %v767 = vpack.c.b16 %v763, %v762
    %v768 = vpack.c.b16 %v765, %v764
    %v770 = vshrl.u32 %v766, 16
    %v772 = vshll.u32 %v766, 16
    %v774 = vrot.slane %v772, 1
    %v775 = vor.u32 %v770, %v774
    %v777 = vshll.u32 %v767, 16
    %v779 = vrot.slane %v777, 1
    %v780 = vsel %vm380, %v775, %v779
    %v781 = vshrl.u32 %v767, 16
    %v783 = vor.u32 %v781, %v779
    %v785 = vshll.u32 %v768, 16
    %v787 = vrot.slane %v785, 1
    %v788 = vsel %vm380, %v783, %v787
    %v789 = vshrl.u32 %v768, 16
    %v791 = vor.u32 %v789, %v787
    %v811 = vunpack.c.l.b16 %v738
    %v812 = vunpack.c.l.b16 %v739
    %v813 = vunpack.c.l.b16 %v740
    %v814 = vunpack.c.l.b16 %v741
    %v815 = vunpack.c.l.b16 %v742
    %v816 = vunpack.c.l.b16 %v743
    %v817 = vunpack.c.l.b16 %v744
    %v818 = vunpack.c.l.b16 %v745
    %v819 = vunpack.c.l.b16 %v746
    %v820 = vunpack.c.l.b16 %v747
    %v821 = vunpack.c.l.b16 %v748
    %v822 = vunpack.c.l.b16 %v749
    %v823 = vunpack.c.l.b16 %v750
    %v824 = vunpack.c.l.b16 %v751
    %v825 = vunpack.c.l.b16 %v752
    %v826 = vunpack.c.l.b16 %v753
    %v827 = vpack.c.b16 %v812, %v811
    %v828 = vpack.c.b16 %v814, %v813
    %v829 = vpack.c.b16 %v816, %v815
    %v830 = vpack.c.b16 %v818, %v817
    %v831 = vpack.c.b16 %v820, %v819
    %v832 = vpack.c.b16 %v822, %v821
    %v833 = vpack.c.b16 %v824, %v823
    %v834 = vpack.c.b16 %v826, %v825
    %843 = vmatpush.bf16.msra.mxu0 %v834
    %844 = vmatpush.bf16.msra.mxu0 %v833
    %845 = vmatpush.bf16.msra.mxu0 %v832
    %846 = vmatpush.bf16.msra.mxu0 %v831
    %847 = vmatpush.bf16.msra.mxu0 %v830
    %848 = vmatpush.bf16.msra.mxu0 %v829
    %849 = vmatpush.bf16.msra.mxu0 %v828
    %850 = vmatpush.bf16.msra.mxu0 %v827
    %851 = vmatmul.bf16.gmra.mxu0 %v780
    %v852 = vpop.f32.mrf.mxu0
    %v853 = vadd.f32 0.0, %v852
    %v854 = vpop.f32.mrf.mxu0
    %v855 = vadd.f32 0.0, %v854
    %856 = vmatmul.bf16.gmra.mxu0 %v788
    %v857 = vpop.f32.mrf.mxu0
    %v858 = vpop.f32.mrf.mxu0
    %v859 = vadd.f32 0.0, %v858
    %860 = vmatmul.bf16.gmra.mxu0 %v791
    %v861 = vpop.f32.mrf.mxu0
    %v862 = vadd.f32 0.0, %v861
    %v863 = vpop.f32.mrf.mxu0
    %864 = vdwg.mxu0
    %v865 = vadd.f32 %v719, %v853
    %v866 = vadd.f32 %v721, %v855
    %v867 = vadd.f32 %v725, %v859
    %v868 = vadd.f32 %v728, %v862
    %v869 = vld [vmem:[#allocation2 + $0x8] sm:$0xff]
    %v870 = vld [vmem:[#allocation2 + $0x10] sm:$0xff]
    %v871 = vadd.f32 %v869, %v865
    %v872 = vadd.f32 %v870, %v866
    %873 = vst [vmem:[#allocation2 + $0x8] sm:$0xff] %v871
    %874 = vst [vmem:[#allocation2 + $0x10] sm:$0xff] %v872
    %v875 = vpack.c.bf16 %v871, %v871
    %v876 = vpack.c.bf16 %v872, %v872
    %877 = vst [vmem:[#allocation3 + $0x4] sm:$0xf] %v875
    %878 = vst [vmem:[#allocation3 + $0x8] sm:$0xf] %v876
    %v879 = vld [vmem:[#allocation2 + $0x20] sm:$0xff]
    %v880 = vld [vmem:[#allocation2 + $0x28] sm:$0xff]
    %v881 = vadd.f32 %v879, %v867
    %v882 = vadd.f32 %v880, %v868
    %883 = vst [vmem:[#allocation2 + $0x20] sm:$0xff] %v881
    %884 = vst [vmem:[#allocation2 + $0x28] sm:$0xff] %v882
    %v885 = vpack.c.bf16 %v881, %v881
    %v886 = vpack.c.bf16 %v882, %v882
    %887 = vst [vmem:[#allocation3 + $0x10] sm:$0xf] %v885
    %888 = vst [vmem:[#allocation3 + $0x14] sm:$0xf] %v886
    %v889 = vld [vmem:[#allocation3] sm:$0x8]
    %v890 = vld [vmem:[#allocation3 + $0x4] sm:$0xf]
    %v891 = vld [vmem:[#allocation3 + $0x8] sm:$0xf]
    %v892 = vld [vmem:[#allocation3 + $0xc] sm:$0xf]
    %v893 = vld [vmem:[#allocation3 + $0x10] sm:$0xf]
    %v894 = vld [vmem:[#allocation3 + $0x14] sm:$0xf]
    %s895 = scalar_lea.vmem [#allocation7], 384
    %v896 = vld [vmem:[%s895] sm:$0xf]
    %v897 = vld [vmem:[%s895 + $0x4] sm:$0xf]
    %v898 = vld [vmem:[%s895 + $0x8] sm:$0xf]
    %v899 = vld [vmem:[%s895 + $0xc] sm:$0xf]
    %v900 = vld [vmem:[%s895 + $0x10] sm:$0xf]
    %v901 = vld [vmem:[%s895 + $0x14] sm:$0xf]
    %v902 = vld [vmem:[%s895 + $0x18] sm:$0xf]
    %v903 = vld [vmem:[%s895 + $0x1c] sm:$0xf]
    %v904 = vld [vmem:[%s895 + $0x20] sm:$0xf]
    %v905 = vld [vmem:[%s895 + $0x24] sm:$0xf]
    %v906 = vld [vmem:[%s895 + $0x28] sm:$0xf]
    %v907 = vld [vmem:[%s895 + $0x2c] sm:$0xf]
    %v908 = vld [vmem:[%s895 + $0x30] sm:$0xf]
    %v909 = vld [vmem:[%s895 + $0x34] sm:$0xf]
    %v910 = vld [vmem:[%s895 + $0x38] sm:$0xf]
    %v911 = vld [vmem:[%s895 + $0x3c] sm:$0xf]
    %s912 = scalar_lea.vmem [#allocation7], 448
    %v913 = vld [vmem:[%s912] sm:$0xf]
    %v914 = vld [vmem:[%s912 + $0x4] sm:$0xf]
    %v915 = vld [vmem:[%s912 + $0x8] sm:$0xf]
    %v916 = vld [vmem:[%s912 + $0xc] sm:$0xf]
    %v917 = vld [vmem:[%s912 + $0x10] sm:$0xf]
    %v918 = vld [vmem:[%s912 + $0x14] sm:$0xf]
    %v919 = vld [vmem:[%s912 + $0x18] sm:$0xf]
    %v920 = vld [vmem:[%s912 + $0x1c] sm:$0xf]
    %v921 = vld [vmem:[%s912 + $0x20] sm:$0xf]
    %v922 = vld [vmem:[%s912 + $0x24] sm:$0xf]
    %v923 = vld [vmem:[%s912 + $0x28] sm:$0xf]
    %v924 = vld [vmem:[%s912 + $0x2c] sm:$0xf]
    %v925 = vld [vmem:[%s912 + $0x30] sm:$0xf]
    %v926 = vld [vmem:[%s912 + $0x34] sm:$0xf]
    %v927 = vld [vmem:[%s912 + $0x38] sm:$0xf]
    %v928 = vld [vmem:[%s912 + $0x3c] sm:$0xf]
    %v934 = vunpack.c.l.b16 %v890
    %v935 = vunpack.c.l.b16 %v891
    %v936 = vunpack.c.l.b16 %v892
    %v937 = vunpack.c.l.b16 %v893
    %v938 = vunpack.c.l.b16 %v894
    %v939 = vpack.c.b16 %v935, %v934
    %v940 = vpack.c.b16 %v937, %v936
    %v941 = vpack.c.b16 %v938, %v938
    %v961 = vunpack.c.l.b16 %v913
    %v962 = vunpack.c.l.b16 %v914
    %v963 = vunpack.c.l.b16 %v915
    %v964 = vunpack.c.l.b16 %v916
    %v965 = vunpack.c.l.b16 %v917
    %v966 = vunpack.c.l.b16 %v918
    %v967 = vunpack.c.l.b16 %v919
    %v968 = vunpack.c.l.b16 %v920
    %v969 = vunpack.c.l.b16 %v921
    %v970 = vunpack.c.l.b16 %v922
    %v971 = vunpack.c.l.b16 %v923
    %v972 = vunpack.c.l.b16 %v924
    %v973 = vunpack.c.l.b16 %v925
    %v974 = vunpack.c.l.b16 %v926
    %v975 = vunpack.c.l.b16 %v927
    %v976 = vunpack.c.l.b16 %v928
    %v977 = vpack.c.b16 %v962, %v961
    %v978 = vpack.c.b16 %v964, %v963
    %v979 = vpack.c.b16 %v966, %v965
    %v980 = vpack.c.b16 %v968, %v967
    %v981 = vpack.c.b16 %v970, %v969
    %v982 = vpack.c.b16 %v972, %v971
    %v983 = vpack.c.b16 %v974, %v973
    %v984 = vpack.c.b16 %v976, %v975
    %993 = vmatpush.bf16.msra.mxu0 %v984
    %994 = vmatpush.bf16.msra.mxu0 %v983
    %995 = vmatpush.bf16.msra.mxu0 %v982
    %996 = vmatpush.bf16.msra.mxu0 %v981
    %997 = vmatpush.bf16.msra.mxu0 %v980
    %998 = vmatpush.bf16.msra.mxu0 %v979
    %999 = vmatpush.bf16.msra.mxu0 %v978
    %1000 = vmatpush.bf16.msra.mxu0 %v977
    %1001 = vmatmul.bf16.gmra.mxu0 %v939
    %v1002 = vpop.f32.mrf.mxu0
    %v1003 = vadd.f32 0.0, %v1002
    %v1004 = vpop.f32.mrf.mxu0
    %v1005 = vadd.f32 0.0, %v1004
    %1006 = vmatmul.bf16.gmra.mxu0 %v940
    %v1007 = vpop.f32.mrf.mxu0
    %v1008 = vpop.f32.mrf.mxu0
    %v1009 = vadd.f32 0.0, %v1008
    %1010 = vmatmul.bf16.gmra.mxu0 %v941
    %v1011 = vpop.f32.mrf.mxu0
    %v1012 = vadd.f32 0.0, %v1011
    %v1013 = vpop.f32.mrf.mxu0
    %1014 = vdwg.mxu0
    %v1016 = vunpack.c.l.b16 %v889
    %v1017 = vpack.c.b16 %v934, %v1016
    %v1018 = vpack.c.b16 %v936, %v935
    %v1019 = vpack.c.b16 %v938, %v937
    %v1021 = vshrl.u32 %v1017, 16
    %v1023 = vrot.slane %v1021, 3
    %v1024 = vshll.u32 %v1017, 16
    %v1026 = vrot.slane %v1024, 4
    %v1027 = vor.u32 %v1023, %v1026
    %v1029 = vshrl.u32 %v1018, 16
    %v1031 = vrot.slane %v1029, 3
    %v1032 = vshll.u32 %v1018, 16
    %v1034 = vrot.slane %v1032, 4
    %v1035 = vor.u32 %v1031, %v1034
    %v1036 = vsel %vm242, %v1027, %v1035
    %v1038 = vshrl.u32 %v1019, 16
    %v1040 = vrot.slane %v1038, 3
    %v1041 = vshll.u32 %v1019, 16
    %v1043 = vrot.slane %v1041, 4
    %v1044 = vor.u32 %v1040, %v1043
    %v1045 = vsel %vm242, %v1035, %v1044
    %v1065 = vunpack.c.l.b16 %v896
    %v1066 = vunpack.c.l.b16 %v897
    %v1067 = vunpack.c.l.b16 %v898
    %v1068 = vunpack.c.l.b16 %v899
    %v1069 = vunpack.c.l.b16 %v900
    %v1070 = vunpack.c.l.b16 %v901
    %v1071 = vunpack.c.l.b16 %v902
    %v1072 = vunpack.c.l.b16 %v903
    %v1073 = vunpack.c.l.b16 %v904
    %v1074 = vunpack.c.l.b16 %v905
    %v1075 = vunpack.c.l.b16 %v906
    %v1076 = vunpack.c.l.b16 %v907
    %v1077 = vunpack.c.l.b16 %v908
    %v1078 = vunpack.c.l.b16 %v909
    %v1079 = vunpack.c.l.b16 %v910
    %v1080 = vunpack.c.l.b16 %v911
    %v1081 = vpack.c.b16 %v1066, %v1065
    %v1082 = vpack.c.b16 %v1068, %v1067
    %v1083 = vpack.c.b16 %v1070, %v1069
    %v1084 = vpack.c.b16 %v1072, %v1071
    %v1085 = vpack.c.b16 %v1074, %v1073
    %v1086 = vpack.c.b16 %v1076, %v1075
    %v1087 = vpack.c.b16 %v1078, %v1077
    %v1088 = vpack.c.b16 %v1080, %v1079
    %1097 = vmatpush.bf16.msra.mxu0 %v1088
    %1098 = vmatpush.bf16.msra.mxu0 %v1087
    %1099 = vmatpush.bf16.msra.mxu0 %v1086
    %1100 = vmatpush.bf16.msra.mxu0 %v1085
    %1101 = vmatpush.bf16.msra.mxu0 %v1084
    %1102 = vmatpush.bf16.msra.mxu0 %v1083
    %1103 = vmatpush.bf16.msra.mxu0 %v1082
    %1104 = vmatpush.bf16.msra.mxu0 %v1081
    %1105 = vmatmul.bf16.gmra.mxu0 %v1036
    %v1106 = vpop.f32.mrf.mxu0
    %v1107 = vadd.f32 %v1003, %v1106
    %v1108 = vpop.f32.mrf.mxu0
    %v1109 = vadd.f32 %v1005, %v1108
    %1110 = vmatmul.bf16.gmra.mxu0 %v1045
    %v1111 = vpop.f32.mrf.mxu0
    %v1112 = vpop.f32.mrf.mxu0
    %v1113 = vadd.f32 %v1009, %v1112
    %1114 = vmatmul.bf16.gmra.mxu0 %v1044
    %v1115 = vpop.f32.mrf.mxu0
    %v1116 = vadd.f32 %v1012, %v1115
    %v1117 = vpop.f32.mrf.mxu0
    %1118 = vdwg.mxu0
    %v1119 = vld [vmem:[#allocation3 + $0x4] sm:$0xf]
    %v1120 = vld [vmem:[#allocation3 + $0x8] sm:$0xf]
    %v1121 = vld [vmem:[#allocation3 + $0xc] sm:$0xf]
    %v1122 = vld [vmem:[#allocation3 + $0x10] sm:$0xf]
    %v1123 = vld [vmem:[#allocation3 + $0x14] sm:$0xf]
    %v1124 = vld [vmem:[#allocation3 + $0x18] sm:$0x1]
    %s1125 = scalar_lea.vmem [#allocation7], 512
    %v1126 = vld [vmem:[%s1125] sm:$0xf]
    %v1127 = vld [vmem:[%s1125 + $0x4] sm:$0xf]
    %v1128 = vld [vmem:[%s1125 + $0x8] sm:$0xf]
    %v1129 = vld [vmem:[%s1125 + $0xc] sm:$0xf]
    %v1130 = vld [vmem:[%s1125 + $0x10] sm:$0xf]
    %v1131 = vld [vmem:[%s1125 + $0x14] sm:$0xf]
    %v1132 = vld [vmem:[%s1125 + $0x18] sm:$0xf]
    %v1133 = vld [vmem:[%s1125 + $0x1c] sm:$0xf]
    %v1134 = vld [vmem:[%s1125 + $0x20] sm:$0xf]
    %v1135 = vld [vmem:[%s1125 + $0x24] sm:$0xf]
    %v1136 = vld [vmem:[%s1125 + $0x28] sm:$0xf]
    %v1137 = vld [vmem:[%s1125 + $0x2c] sm:$0xf]
    %v1138 = vld [vmem:[%s1125 + $0x30] sm:$0xf]
    %v1139 = vld [vmem:[%s1125 + $0x34] sm:$0xf]
    %v1140 = vld [vmem:[%s1125 + $0x38] sm:$0xf]
    %v1141 = vld [vmem:[%s1125 + $0x3c] sm:$0xf]
    %v1148 = vunpack.c.l.b16 %v1119
    %v1149 = vunpack.c.l.b16 %v1120
    %v1150 = vunpack.c.l.b16 %v1121
    %v1151 = vunpack.c.l.b16 %v1122
    %v1152 = vunpack.c.l.b16 %v1123
    %v1153 = vunpack.c.l.b16 %v1124
    %v1154 = vpack.c.b16 %v1149, %v1148
    %v1155 = vpack.c.b16 %v1151, %v1150
    %v1156 = vpack.c.b16 %v1153, %v1152
    %v1158 = vshrl.u32 %v1154, 16
    %v1160 = vshll.u32 %v1154, 16
    %v1162 = vrot.slane %v1160, 1
    %v1163 = vor.u32 %v1158, %v1162
    %v1165 = vshll.u32 %v1155, 16
    %v1167 = vrot.slane %v1165, 1
    %v1168 = vsel %vm380, %v1163, %v1167
    %v1169 = vshrl.u32 %v1155, 16
    %v1171 = vor.u32 %v1169, %v1167
    %v1173 = vshll.u32 %v1156, 16
    %v1175 = vrot.slane %v1173, 1
    %v1176 = vsel %vm380, %v1171, %v1175
    %v1177 = vshrl.u32 %v1156, 16
    %v1179 = vor.u32 %v1177, %v1175
    %v1199 = vunpack.c.l.b16 %v1126
    %v1200 = vunpack.c.l.b16 %v1127
    %v1201 = vunpack.c.l.b16 %v1128
    %v1202 = vunpack.c.l.b16 %v1129
    %v1203 = vunpack.c.l.b16 %v1130
    %v1204 = vunpack.c.l.b16 %v1131
    %v1205 = vunpack.c.l.b16 %v1132
    %v1206 = vunpack.c.l.b16 %v1133
    %v1207 = vunpack.c.l.b16 %v1134
    %v1208 = vunpack.c.l.b16 %v1135
    %v1209 = vunpack.c.l.b16 %v1136
    %v1210 = vunpack.c.l.b16 %v1137
    %v1211 = vunpack.c.l.b16 %v1138
    %v1212 = vunpack.c.l.b16 %v1139
    %v1213 = vunpack.c.l.b16 %v1140
    %v1214 = vunpack.c.l.b16 %v1141
    %v1215 = vpack.c.b16 %v1200, %v1199
    %v1216 = vpack.c.b16 %v1202, %v1201
    %v1217 = vpack.c.b16 %v1204, %v1203
    %v1218 = vpack.c.b16 %v1206, %v1205
    %v1219 = vpack.c.b16 %v1208, %v1207
    %v1220 = vpack.c.b16 %v1210, %v1209
    %v1221 = vpack.c.b16 %v1212, %v1211
    %v1222 = vpack.c.b16 %v1214, %v1213
    %1231 = vmatpush.bf16.msra.mxu0 %v1222
    %1232 = vmatpush.bf16.msra.mxu0 %v1221
    %1233 = vmatpush.bf16.msra.mxu0 %v1220
    %1234 = vmatpush.bf16.msra.mxu0 %v1219
    %1235 = vmatpush.bf16.msra.mxu0 %v1218
    %1236 = vmatpush.bf16.msra.mxu0 %v1217
    %1237 = vmatpush.bf16.msra.mxu0 %v1216
    %1238 = vmatpush.bf16.msra.mxu0 %v1215
    %1239 = vmatmul.bf16.gmra.mxu0 %v1168
    %v1240 = vpop.f32.mrf.mxu0
    %v1241 = vadd.f32 0.0, %v1240
    %v1242 = vpop.f32.mrf.mxu0
    %v1243 = vadd.f32 0.0, %v1242
    %1244 = vmatmul.bf16.gmra.mxu0 %v1176
    %v1245 = vpop.f32.mrf.mxu0
    %v1246 = vpop.f32.mrf.mxu0
    %v1247 = vadd.f32 0.0, %v1246
    %1248 = vmatmul.bf16.gmra.mxu0 %v1179
    %v1249 = vpop.f32.mrf.mxu0
    %v1250 = vadd.f32 0.0, %v1249
    %v1251 = vpop.f32.mrf.mxu0
    %1252 = vdwg.mxu0
    %v1253 = vadd.f32 %v1107, %v1241
    %v1254 = vadd.f32 %v1109, %v1243
    %v1255 = vadd.f32 %v1113, %v1247
    %v1256 = vadd.f32 %v1116, %v1250
    %v1257 = vld [vmem:[#allocation2 + $0x8] sm:$0xff]
    %v1258 = vld [vmem:[#allocation2 + $0x10] sm:$0xff]
    %v1259 = vadd.f32 %v1257, %v1253
    %v1260 = vadd.f32 %v1258, %v1254
    %1261 = vst [vmem:[#allocation2 + $0x8] sm:$0xff] %v1259
    %1262 = vst [vmem:[#allocation2 + $0x10] sm:$0xff] %v1260
    %v1263 = vpack.c.bf16 %v1259, %v1259
    %v1264 = vpack.c.bf16 %v1260, %v1260
    %1265 = vst [vmem:[#allocation3 + $0x4] sm:$0xf] %v1263
    %1266 = vst [vmem:[#allocation3 + $0x8] sm:$0xf] %v1264
    %v1267 = vld [vmem:[#allocation2 + $0x20] sm:$0xff]
    %v1268 = vld [vmem:[#allocation2 + $0x28] sm:$0xff]
    %v1269 = vadd.f32 %v1267, %v1255
    %v1270 = vadd.f32 %v1268, %v1256
    %1271 = vst [vmem:[#allocation2 + $0x20] sm:$0xff] %v1269
    %1272 = vst [vmem:[#allocation2 + $0x28] sm:$0xff] %v1270
    %v1273 = vpack.c.bf16 %v1269, %v1269
    %v1274 = vpack.c.bf16 %v1270, %v1270
    %1275 = vst [vmem:[#allocation3 + $0x10] sm:$0xf] %v1273
    %1276 = vst [vmem:[#allocation3 + $0x14] sm:$0xf] %v1274
    %v1277 = vld [vmem:[#allocation2 + $0x8] sm:$0xff]
    %v1278 = vld [vmem:[#allocation2 + $0x10] sm:$0xff]
    %1279 = vst [vmem:[#allocation9] sm:$0xff] %v1277
    %1280 = vst [vmem:[#allocation9 + $0x8] sm:$0xff] %v1278
    %v1281 = vld [vmem:[#allocation2 + $0x20] sm:$0xff]
    %v1282 = vld [vmem:[#allocation2 + $0x28] sm:$0xff]
    %s1283 = scalar_lea.vmem [#allocation9], 16
    %1284 = vst [vmem:[%s1283] sm:$0xff] %v1281
    %1285 = vst [vmem:[%s1283 + $0x8] sm:$0xff] %v1282
    // Predicated region
    $region18: #{tpu_custom_call.1} parent=1 // pred_check
      _
    $region19: #{tpu_custom_call.1} parent=1 // pred_check_branch
      %1287 = sbr.rel (0) target = $region21
    $region20: #{tpu_custom_call.1} parent=1 // pred_region
      %1289 = vsyncadd [#allocation6], 0
      %s1290 = sshll.u32 [#allocation9], 4
      %s1291 = int_to_ptr.vmem [resolvable:$true] %s1290
      %s1292 = sshll.u32 %s2, 4
      %s1293 = int_to_ptr.hbm [resolvable:$true] %s1292
      %1298 = dma.vmem_to_hbm [thread:$0]  %s1291, 512, %s1293, [#allocation6], 128, 128, 8
    $region21: #{tpu_custom_call.1} parent=1 // pred_fallthru
      _
    // Predicated region
    $region22: #{tpu_custom_call.1} parent=1 // pred_check
      _
    $region23: #{tpu_custom_call.1} parent=1 // pred_check_branch
      %1300 = sbr.rel (0) target = $region25
    $region24: #{tpu_custom_call.1} parent=1 // pred_region
      %1302 = dma.done [#allocation6], 512
    $region25: #{tpu_custom_call.1} parent=1 // pred_fallthru
      _
    %1303 = vsyncpa [#allocation5], 1
    %1304 = vsyncpa [#allocation8], 1
    %1305 = vsyncpa [#allocation6], 1

</llo_original>
